<compile_context>
chip_gen: v7x
topology: tpu7x:2x2x1
jax: 0.10.0
libtpu: 0.0.40
codegen_flags: <defaults>
</compile_context>

<pallas_src>
import functools

import jax
import jax.numpy as jnp
from jax.experimental import pallas as pl
from jax.experimental.pallas import tpu as pltpu


def _round_up(x: int, m: int) -> int:
    return (x + m - 1) // m * m


def mlp_kernel(x_ref, w1_ref, b1_ref, w2_ref, b2_ref, w3_ref, b3_ref, o_ref):
    """One batch tile: 3 MXU matmuls (bf16 in, f32 acc) + ReLUs, all in VMEM."""
    x = x_ref[...]                                                   # (TM, d_in) bf16
    h1 = jnp.dot(x, w1_ref[...], preferred_element_type=jnp.float32) + b1_ref[...]
    h1 = jnp.maximum(h1, 0.0).astype(jnp.bfloat16)                   # (TM, h1)
    h2 = jnp.dot(h1, w2_ref[...], preferred_element_type=jnp.float32) + b2_ref[...]
    h2 = jnp.maximum(h2, 0.0).astype(jnp.bfloat16)                   # (TM, h2)
    out = jnp.dot(h2, w3_ref[...], preferred_element_type=jnp.float32) + b3_ref[...]
    o_ref[...] = out.astype(o_ref.dtype)                             # (TM, d_out) f32


@functools.partial(jax.jit, static_argnames=("tm_cap",))
def neural_network_forward(x_nchw, params, *, tm_cap=256):
    """Equivalent of NeuralNetwork.forward for NCHW input of shape (B,4,num,num).

    tm_cap: batch-tile cap; use 128 on v5e (128-wide MXU), 256 on v6e/v7x.
    """
    w1, b1, w2, b2, w3, b3 = params
    B = x_nchw.shape[0]
    d_in, h1 = w1.shape
    h2 = w2.shape[1]
    d_out = w3.shape[1]

    # Glue: flatten (nn.Flatten) + bf16 cast of streaming operands (once).
    x = x_nchw.reshape(B, d_in).astype(jnp.bfloat16)
    w1b = w1.astype(jnp.bfloat16)
    w2b = w2.astype(jnp.bfloat16)
    w3b = w3.astype(jnp.bfloat16)
    b1f = b1.astype(jnp.float32)
    b2f = b2.astype(jnp.float32)
    b3f = b3.astype(jnp.float32)

    # Batch tile: multiple of 8 (sublane), capped at tm_cap; pad batch to a
    # multiple of the tile so every grid step writes a full block.
    tm = min(tm_cap, _round_up(B, 8))
    b_pad = _round_up(B, tm)
    if b_pad != B:
        x = jnp.pad(x, ((0, b_pad - B), (0, 0)))
    grid = (pl.cdiv(b_pad, tm),)

    # Activation tiles move with the grid; weights/biases are pinned (constant
    # index_map -> fetched once, resident in VMEM across the whole batch loop).
    act_in_spec = pl.BlockSpec((tm, d_in), lambda i: (i, 0))
    out_spec = pl.BlockSpec((tm, d_out), lambda i: (i, 0))
    w_spec = lambda fi, fo: pl.BlockSpec((fi, fo), lambda i: (0, 0))
    b_spec = lambda fo: pl.BlockSpec((1, fo), lambda i: (0, 0))

    flops = 2 * b_pad * (d_in * h1 + h1 * h2 + h2 * d_out)
    bytes_accessed = (
        x.size * 2                                 # bf16 activations in
        + (w1b.size + w2b.size + w3b.size) * 2     # bf16 weights
        + (b1f.size + b2f.size + b3f.size) * 4     # f32 biases
        + b_pad * d_out * 4                        # f32 output
    )

    out = pl.pallas_call(
        mlp_kernel,
        out_shape=jax.ShapeDtypeStruct((b_pad, d_out), jnp.float32),
        grid_spec=pltpu.PrefetchScalarGridSpec(
            num_scalar_prefetch=0,
            grid=grid,
            in_specs=[
                act_in_spec,
                w_spec(d_in, h1), b_spec(h1),
                w_spec(h1, h2), b_spec(h2),
                w_spec(h2, d_out), b_spec(d_out),
            ],
            out_specs=out_spec,
        ),
        compiler_params=pltpu.CompilerParams(
            dimension_semantics=("parallel",),
        ),
        cost_estimate=pl.CostEstimate(
            flops=flops, transcendentals=0, bytes_accessed=bytes_accessed
        ),
    )(x, w1b, b1f, w2b, b2f, w3b, b3f)

    return out[:B]


def init_params(key, num, dtype=jnp.float32):
    """Mimics PyTorch default init U(-1/sqrt(fan_in), 1/sqrt(fan_in)).

    Weights stored as (in_features, out_features); biases as (1, out_features)."""
    d_in = 4 * num * num
    h1 = 8 * num
    h2 = 16 * num
    d_out = 4 * num * num
    dims = [(d_in, h1), (h1, h2), (h2, d_out)]
    keys = jax.random.split(key, 2 * len(dims))
    params = []
    for i, (fi, fo) in enumerate(dims):
        bound = 1.0 / (fi ** 0.5)
        w = jax.random.uniform(keys[2 * i], (fi, fo), dtype, -bound, bound)
        b = jax.random.uniform(keys[2 * i + 1], (1, fo), dtype, -bound, bound)
        params += [w, b]
    return tuple(params)


def reference_forward(x_nchw, params):
    """Pure-JAX reference using the same bf16-weight / f32-accumulate recipe."""
    w1, b1, w2, b2, w3, b3 = params
    x = x_nchw.reshape(x_nchw.shape[0], -1).astype(jnp.bfloat16)
    h1 = jnp.dot(x, w1.astype(jnp.bfloat16), preferred_element_type=jnp.float32) + b1
    h1 = jnp.maximum(h1, 0.0).astype(jnp.bfloat16)
    h2 = jnp.dot(h1, w2.astype(jnp.bfloat16), preferred_element_type=jnp.float32) + b2
    h2 = jnp.maximum(h2, 0.0).astype(jnp.bfloat16)
    return jnp.dot(h2, w3.astype(jnp.bfloat16), preferred_element_type=jnp.float32) + b3


if __name__ == "__main__":
    num = 16  # layers: 1024 -> 128 -> 256 -> 1024 (lane-aligned)
    key = jax.random.PRNGKey(0)
    kx, kp, kx2 = jax.random.split(key, 3)
    params = init_params(kp, num)

    # Small-batch check (single grid step).
    batch = 8
    x = jax.random.normal(kx, (batch, 4, num, num), dtype=jnp.float32)
    out = jax.block_until_ready(neural_network_forward(x, params))
    ref = reference_forward(x, params)
    assert out.shape == (batch, 4 * num * num), out.shape
    assert jnp.allclose(out, ref, atol=2e-2, rtol=2e-2), "mismatch vs reference (B=8)"

    # Larger batch exercising the batch grid (TM=256 -> 2 steps) + tail padding.
    batch2 = 384
    x2 = jax.random.normal(kx2, (batch2, 4, num, num), dtype=jnp.float32)
    out2 = jax.block_until_ready(neural_network_forward(x2, params))
    ref2 = reference_forward(x2, params)
    assert out2.shape == (batch2, 4 * num * num), out2.shape
    assert jnp.allclose(out2, ref2, atol=2e-2, rtol=2e-2), "mismatch vs reference (B=384)"

    print("KERNEL_OK")
</pallas_src>

<mosaic_0001>
module attributes {stable_mosaic.version = 11 : i64} {
  func.func @mlp_kernel(%arg0: i32, %arg1: memref<8x1024xbf16, #tpu.memory_space<vmem>>, %arg2: memref<1024x128xbf16, #tpu.memory_space<vmem>>, %arg3: memref<1x128xf32, #tpu.memory_space<vmem>>, %arg4: memref<128x256xbf16, #tpu.memory_space<vmem>>, %arg5: memref<1x256xf32, #tpu.memory_space<vmem>>, %arg6: memref<256x1024xbf16, #tpu.memory_space<vmem>>, %arg7: memref<1x1024xf32, #tpu.memory_space<vmem>>, %arg8: memref<8x1024xf32, #tpu.memory_space<vmem>>) attributes {dimension_semantics = [#tpu.dimension_semantics<parallel>], iteration_bounds = array<i64: 1>, scalar_prefetch = 0 : i64, scratch_operands = 0 : i64, tpu.core_type = #tpu.core_type<tc>, window_params = [{transform_indices = @transform_0, window_bounds = array<i64: 8, 1024>}, {pipeline_mode = #tpu.pipeline_mode<synchronous>, transform_indices = @transform_1, window_bounds = array<i64: 1024, 128>}, {pipeline_mode = #tpu.pipeline_mode<synchronous>, transform_indices = @transform_2, window_bounds = array<i64: 1, 128>}, {pipeline_mode = #tpu.pipeline_mode<synchronous>, transform_indices = @transform_3, window_bounds = array<i64: 128, 256>}, {pipeline_mode = #tpu.pipeline_mode<synchronous>, transform_indices = @transform_4, window_bounds = array<i64: 1, 256>}, {pipeline_mode = #tpu.pipeline_mode<synchronous>, transform_indices = @transform_5, window_bounds = array<i64: 256, 1024>}, {pipeline_mode = #tpu.pipeline_mode<synchronous>, transform_indices = @transform_6, window_bounds = array<i64: 1, 1024>}, {transform_indices = @transform_7, window_bounds = array<i64: 8, 1024>}]} {
    %c0 = arith.constant 0 : index
    %c0_0 = arith.constant 0 : index
    %0 = vector.load %arg1[%c0, %c0_0] : memref<8x1024xbf16, #tpu.memory_space<vmem>>, vector<8x1024xbf16>
    %c0_1 = arith.constant 0 : index
    %c0_2 = arith.constant 0 : index
    %1 = vector.load %arg2[%c0_1, %c0_2] : memref<1024x128xbf16, #tpu.memory_space<vmem>>, vector<1024x128xbf16>
    %cst = arith.constant dense<0.000000e+00> : vector<8x128xf32>
    %2 = tpu.matmul %0, %1, %cst {dimension_numbers = #tpu.dot_dimension_numbers<[1], [0], [0], [1], [0, 0, 1, 1], [], []>} : vector<8x1024xbf16>, vector<1024x128xbf16>, vector<8x128xf32> -> vector<8x128xf32>
    %c0_3 = arith.constant 0 : index
    %c0_4 = arith.constant 0 : index
    %3 = vector.load %arg3[%c0_3, %c0_4] : memref<1x128xf32, #tpu.memory_space<vmem>>, vector<1x128xf32>
    %4 = vector.broadcast %3 : vector<1x128xf32> to vector<8x128xf32>
    %5 = arith.addf %2, %4 : vector<8x128xf32>
    %cst_5 = arith.constant 0.000000e+00 : f32
    %6 = vector.broadcast %cst_5 : f32 to vector<8x128xf32>
    %7 = arith.maximumf %5, %6 : vector<8x128xf32>
    %8 = arith.truncf %7 : vector<8x128xf32> to vector<8x128xbf16>
    %c0_6 = arith.constant 0 : index
    %c0_7 = arith.constant 0 : index
    %9 = vector.load %arg4[%c0_6, %c0_7] : memref<128x256xbf16, #tpu.memory_space<vmem>>, vector<128x256xbf16>
    %cst_8 = arith.constant dense<0.000000e+00> : vector<8x256xf32>
    %10 = tpu.matmul %8, %9, %cst_8 {dimension_numbers = #tpu.dot_dimension_numbers<[1], [0], [0], [1], [0, 0, 1, 1], [], []>} : vector<8x128xbf16>, vector<128x256xbf16>, vector<8x256xf32> -> vector<8x256xf32>
    %c0_9 = arith.constant 0 : index
    %c0_10 = arith.constant 0 : index
    %11 = vector.load %arg5[%c0_9, %c0_10] : memref<1x256xf32, #tpu.memory_space<vmem>>, vector<1x256xf32>
    %12 = vector.broadcast %11 : vector<1x256xf32> to vector<8x256xf32>
    %13 = arith.addf %10, %12 : vector<8x256xf32>
    %cst_11 = arith.constant 0.000000e+00 : f32
    %14 = vector.broadcast %cst_11 : f32 to vector<8x256xf32>
    %15 = arith.maximumf %13, %14 : vector<8x256xf32>
    %16 = arith.truncf %15 : vector<8x256xf32> to vector<8x256xbf16>
    %c0_12 = arith.constant 0 : index
    %c0_13 = arith.constant 0 : index
    %17 = vector.load %arg6[%c0_12, %c0_13] : memref<256x1024xbf16, #tpu.memory_space<vmem>>, vector<256x1024xbf16>
    %cst_14 = arith.constant dense<0.000000e+00> : vector<8x1024xf32>
    %18 = tpu.matmul %16, %17, %cst_14 {dimension_numbers = #tpu.dot_dimension_numbers<[1], [0], [0], [1], [0, 0, 1, 1], [], []>} : vector<8x256xbf16>, vector<256x1024xbf16>, vector<8x1024xf32> -> vector<8x1024xf32>
    %c0_15 = arith.constant 0 : index
    %c0_16 = arith.constant 0 : index
    %19 = vector.load %arg7[%c0_15, %c0_16] : memref<1x1024xf32, #tpu.memory_space<vmem>>, vector<1x1024xf32>
    %20 = vector.broadcast %19 : vector<1x1024xf32> to vector<8x1024xf32>
    %21 = arith.addf %18, %20 : vector<8x1024xf32>
    %c0_17 = arith.constant 0 : index
    %c0_18 = arith.constant 0 : index
    %22 = vector.load %arg8[%c0_17, %c0_18] : memref<8x1024xf32, #tpu.memory_space<vmem>>, vector<8x1024xf32>
    tpu.vector_store %arg8[%c0_17, %c0_18], %21 {strides = array<i32>} : memref<8x1024xf32, #tpu.memory_space<vmem>>, vector<8x1024xf32>,
    return
  }
  func.func @transform_0(%arg0: i32) -> (i32, i32) {
    %c0_i32 = arith.constant 0 : i32
    %c0_i32_0 = arith.constant 0 : i32
    return %arg0, %c0_i32 : i32, i32
  }
  func.func @transform_1(%arg0: i32) -> (i32, i32) {
    %c0_i32 = arith.constant 0 : i32
    %c0_i32_0 = arith.constant 0 : i32
    %c0_i32_1 = arith.constant 0 : i32
    return %c0_i32, %c0_i32_0 : i32, i32
  }
  func.func @transform_2(%arg0: i32) -> (i32, i32) {
    %c0_i32 = arith.constant 0 : i32
    %c0_i32_0 = arith.constant 0 : i32
    %c0_i32_1 = arith.constant 0 : i32
    return %c0_i32, %c0_i32_0 : i32, i32
  }
  func.func @transform_3(%arg0: i32) -> (i32, i32) {
    %c0_i32 = arith.constant 0 : i32
    %c0_i32_0 = arith.constant 0 : i32
    %c0_i32_1 = arith.constant 0 : i32
    return %c0_i32, %c0_i32_0 : i32, i32
  }
  func.func @transform_4(%arg0: i32) -> (i32, i32) {
    %c0_i32 = arith.constant 0 : i32
    %c0_i32_0 = arith.constant 0 : i32
    %c0_i32_1 = arith.constant 0 : i32
    return %c0_i32, %c0_i32_0 : i32, i32
  }
  func.func @transform_5(%arg0: i32) -> (i32, i32) {
    %c0_i32 = arith.constant 0 : i32
    %c0_i32_0 = arith.constant 0 : i32
    %c0_i32_1 = arith.constant 0 : i32
    return %c0_i32, %c0_i32_0 : i32, i32
  }
  func.func @transform_6(%arg0: i32) -> (i32, i32) {
    %c0_i32 = arith.constant 0 : i32
    %c0_i32_0 = arith.constant 0 : i32
    %c0_i32_1 = arith.constant 0 : i32
    return %c0_i32, %c0_i32_0 : i32, i32
  }
  func.func @transform_7(%arg0: i32) -> (i32, i32) {
    %c0_i32 = arith.constant 0 : i32
    %c0_i32_0 = arith.constant 0 : i32
    return %arg0, %c0_i32 : i32, i32
  }
}

</mosaic_0001>

<llo_original>
// kernel: neural_network_forward.1
$region0: #{neural_network_forward.1}
  #allocation0 [shape = 'u32[]', space=smem, size = 0x4, offset = 0x4, fixed_abs, tag = 'smem constant byte address 0x4 - core index']
  #allocation1 [shape = 'u32[144,128]{1,0:T(1,128)}', space=vmem, size = 0x12000, scoped, tag = 'internal scratch']
  %s0 = inlined_call_operand.vmem [shape: bf16[8,1024], index: 0, kind: input, shape index: {}]
  %s1 = inlined_call_operand.vmem [shape: bf16[1024,128], index: 1, kind: input, shape index: {}]
  %s2 = inlined_call_operand.vmem [shape: f32[1,128], index: 2, kind: input, shape index: {}]
  %s3 = inlined_call_operand.vmem [shape: bf16[128,256], index: 3, kind: input, shape index: {}]
  %s4 = inlined_call_operand.vmem [shape: f32[1,256], index: 4, kind: input, shape index: {}]
  %s5 = inlined_call_operand.vmem [shape: bf16[256,1024], index: 5, kind: input, shape index: {}]
  %s6 = inlined_call_operand.vmem [shape: f32[1,1024], index: 6, kind: input, shape index: {}]
  %s7 = inlined_call_operand.hbm [shape: f32[8,1024], index: 7, kind: output, shape index: {}]
  %s8 = sld [smem:[#allocation0]]
  $region38: #{neural_network_forward.1} parent=0
    _
  %s10 = ssub.s32 1, %s8
  %s11 = scalar_select 0, %s10, %s8
  $region1: #{neural_network_forward.1} parent=0
    #allocation2 [shape = 'u8[32768]{0}', space=vmem, size = 0x8000, scoped, tag = 'output window, operand 0, single buffered']
    #allocation3 [shape = 's32[1]{0}', space=sflag, size = 0x4, scoped, tag = 'scoped memory for neural_network_forward.1']
    %12 = vsyncpa [#allocation3], 0
    // Predicated region
    $region2: #{neural_network_forward.1} parent=1 // pred_check
      _
    $region3: #{neural_network_forward.1} parent=1 // pred_check_branch
      %14 = sbr.rel (0) target = $region5
    $region4: #{neural_network_forward.1} parent=1 // pred_region
      _
    $region5: #{neural_network_forward.1} parent=1 // pred_fallthru
      _
    // Predicated region
    $region6: #{neural_network_forward.1} parent=1 // pred_check
      _
    $region7: #{neural_network_forward.1} parent=1 // pred_check_branch
      %16 = sbr.rel (0) target = $region9
    $region8: #{neural_network_forward.1} parent=1 // pred_region
      _
    $region9: #{neural_network_forward.1} parent=1 // pred_fallthru
      _
    // Predicated region
    $region10: #{neural_network_forward.1} parent=1 // pred_check
      _
    $region11: #{neural_network_forward.1} parent=1 // pred_check_branch
      %18 = sbr.rel (0) target = $region13
    $region12: #{neural_network_forward.1} parent=1 // pred_region
      _
    $region13: #{neural_network_forward.1} parent=1 // pred_fallthru
      _
    // Predicated region
    $region14: #{neural_network_forward.1} parent=1 // pred_check
      _
    $region15: #{neural_network_forward.1} parent=1 // pred_check_branch
      %20 = sbr.rel (0) target = $region17
    $region16: #{neural_network_forward.1} parent=1 // pred_region
      _
    $region17: #{neural_network_forward.1} parent=1 // pred_fallthru
      _
    // Predicated region
    $region18: #{neural_network_forward.1} parent=1 // pred_check
      _
    $region19: #{neural_network_forward.1} parent=1 // pred_check_branch
      %22 = sbr.rel (0) target = $region21
    $region20: #{neural_network_forward.1} parent=1 // pred_region
      _
    $region21: #{neural_network_forward.1} parent=1 // pred_fallthru
      _
    // Predicated region
    $region22: #{neural_network_forward.1} parent=1 // pred_check
      _
    $region23: #{neural_network_forward.1} parent=1 // pred_check_branch
      %24 = sbr.rel (0) target = $region25
    $region24: #{neural_network_forward.1} parent=1 // pred_region
      _
    $region25: #{neural_network_forward.1} parent=1 // pred_fallthru
      _
    // Predicated region
    $region26: #{neural_network_forward.1} parent=1 // pred_check
      _
    $region27: #{neural_network_forward.1} parent=1 // pred_check_branch
      %26 = sbr.rel (0) target = $region29
    $region28: #{neural_network_forward.1} parent=1 // pred_region
      _
    $region29: #{neural_network_forward.1} parent=1 // pred_fallthru
      _
    %v28 = vld [vmem:[%s0] sm:$0xff]
    %v29 = vld [vmem:[%s0 + $0x8] sm:$0xff]
    %v30 = vld [vmem:[%s0 + $0x10] sm:$0xff]
    %v31 = vld [vmem:[%s0 + $0x18] sm:$0xff]
    %v32 = vld [vmem:[%s1] sm:$0xf]
    %v33 = vld [vmem:[%s1 + $0x4] sm:$0xf]
    %v34 = vld [vmem:[%s1 + $0x8] sm:$0xf]
    %v35 = vld [vmem:[%s1 + $0xc] sm:$0xf]
    %v36 = vld [vmem:[%s1 + $0x10] sm:$0xf]
    %v37 = vld [vmem:[%s1 + $0x14] sm:$0xf]
    %v38 = vld [vmem:[%s1 + $0x18] sm:$0xf]
    %v39 = vld [vmem:[%s1 + $0x1c] sm:$0xf]
    %v40 = vld [vmem:[%s1 + $0x20] sm:$0xf]
    %v41 = vld [vmem:[%s1 + $0x24] sm:$0xf]
    %v42 = vld [vmem:[%s1 + $0x28] sm:$0xf]
    %v43 = vld [vmem:[%s1 + $0x2c] sm:$0xf]
    %v44 = vld [vmem:[%s1 + $0x30] sm:$0xf]
    %v45 = vld [vmem:[%s1 + $0x34] sm:$0xf]
    %v46 = vld [vmem:[%s1 + $0x38] sm:$0xf]
    %v47 = vld [vmem:[%s1 + $0x3c] sm:$0xf]
    %v48 = vld [vmem:[%s1 + $0x40] sm:$0xf]
    %v49 = vld [vmem:[%s1 + $0x44] sm:$0xf]
    %v50 = vld [vmem:[%s1 + $0x48] sm:$0xf]
    %v51 = vld [vmem:[%s1 + $0x4c] sm:$0xf]
    %v52 = vld [vmem:[%s1 + $0x50] sm:$0xf]
    %v53 = vld [vmem:[%s1 + $0x54] sm:$0xf]
    %v54 = vld [vmem:[%s1 + $0x58] sm:$0xf]
    %v55 = vld [vmem:[%s1 + $0x5c] sm:$0xf]
    %v56 = vld [vmem:[%s1 + $0x60] sm:$0xf]
    %v57 = vld [vmem:[%s1 + $0x64] sm:$0xf]
    %v58 = vld [vmem:[%s1 + $0x68] sm:$0xf]
    %v59 = vld [vmem:[%s1 + $0x6c] sm:$0xf]
    %v60 = vld [vmem:[%s1 + $0x70] sm:$0xf]
    %v61 = vld [vmem:[%s1 + $0x74] sm:$0xf]
    %v62 = vld [vmem:[%s1 + $0x78] sm:$0xf]
    %v63 = vld [vmem:[%s1 + $0x7c] sm:$0xf]
    %v64 = vld [vmem:[%s1 + $0x80] sm:$0xf]
    %v65 = vld [vmem:[%s1 + $0x84] sm:$0xf]
    %v66 = vld [vmem:[%s1 + $0x88] sm:$0xf]
    %v67 = vld [vmem:[%s1 + $0x8c] sm:$0xf]
    %v68 = vld [vmem:[%s1 + $0x90] sm:$0xf]
    %v69 = vld [vmem:[%s1 + $0x94] sm:$0xf]
    %v70 = vld [vmem:[%s1 + $0x98] sm:$0xf]
    %v71 = vld [vmem:[%s1 + $0x9c] sm:$0xf]
    %v72 = vld [vmem:[%s1 + $0xa0] sm:$0xf]
    %v73 = vld [vmem:[%s1 + $0xa4] sm:$0xf]
    %v74 = vld [vmem:[%s1 + $0xa8] sm:$0xf]
    %v75 = vld [vmem:[%s1 + $0xac] sm:$0xf]
    %v76 = vld [vmem:[%s1 + $0xb0] sm:$0xf]
    %v77 = vld [vmem:[%s1 + $0xb4] sm:$0xf]
    %v78 = vld [vmem:[%s1 + $0xb8] sm:$0xf]
    %v79 = vld [vmem:[%s1 + $0xbc] sm:$0xf]
    %v80 = vld [vmem:[%s1 + $0xc0] sm:$0xf]
    %v81 = vld [vmem:[%s1 + $0xc4] sm:$0xf]
    %v82 = vld [vmem:[%s1 + $0xc8] sm:$0xf]
    %v83 = vld [vmem:[%s1 + $0xcc] sm:$0xf]
    %v84 = vld [vmem:[%s1 + $0xd0] sm:$0xf]
    %v85 = vld [vmem:[%s1 + $0xd4] sm:$0xf]
    %v86 = vld [vmem:[%s1 + $0xd8] sm:$0xf]
    %v87 = vld [vmem:[%s1 + $0xdc] sm:$0xf]
    %v88 = vld [vmem:[%s1 + $0xe0] sm:$0xf]
    %v89 = vld [vmem:[%s1 + $0xe4] sm:$0xf]
    %v90 = vld [vmem:[%s1 + $0xe8] sm:$0xf]
    %v91 = vld [vmem:[%s1 + $0xec] sm:$0xf]
    %v92 = vld [vmem:[%s1 + $0xf0] sm:$0xf]
    %v93 = vld [vmem:[%s1 + $0xf4] sm:$0xf]
    %v94 = vld [vmem:[%s1 + $0xf8] sm:$0xf]
    %v95 = vld [vmem:[%s1 + $0xfc] sm:$0xf]
    %v96 = vld [vmem:[%s1 + $0x100] sm:$0xf]
    %v97 = vld [vmem:[%s1 + $0x104] sm:$0xf]
    %v98 = vld [vmem:[%s1 + $0x108] sm:$0xf]
    %v99 = vld [vmem:[%s1 + $0x10c] sm:$0xf]
    %v100 = vld [vmem:[%s1 + $0x110] sm:$0xf]
    %v101 = vld [vmem:[%s1 + $0x114] sm:$0xf]
    %v102 = vld [vmem:[%s1 + $0x118] sm:$0xf]
    %v103 = vld [vmem:[%s1 + $0x11c] sm:$0xf]
    %v104 = vld [vmem:[%s1 + $0x120] sm:$0xf]
    %v105 = vld [vmem:[%s1 + $0x124] sm:$0xf]
    %v106 = vld [vmem:[%s1 + $0x128] sm:$0xf]
    %v107 = vld [vmem:[%s1 + $0x12c] sm:$0xf]
    %v108 = vld [vmem:[%s1 + $0x130] sm:$0xf]
    %v109 = vld [vmem:[%s1 + $0x134] sm:$0xf]
    %v110 = vld [vmem:[%s1 + $0x138] sm:$0xf]
    %v111 = vld [vmem:[%s1 + $0x13c] sm:$0xf]
    %v112 = vld [vmem:[%s1 + $0x140] sm:$0xf]
    %v113 = vld [vmem:[%s1 + $0x144] sm:$0xf]
    %v114 = vld [vmem:[%s1 + $0x148] sm:$0xf]
    %v115 = vld [vmem:[%s1 + $0x14c] sm:$0xf]
    %v116 = vld [vmem:[%s1 + $0x150] sm:$0xf]
    %v117 = vld [vmem:[%s1 + $0x154] sm:$0xf]
    %v118 = vld [vmem:[%s1 + $0x158] sm:$0xf]
    %v119 = vld [vmem:[%s1 + $0x15c] sm:$0xf]
    %v120 = vld [vmem:[%s1 + $0x160] sm:$0xf]
    %v121 = vld [vmem:[%s1 + $0x164] sm:$0xf]
    %v122 = vld [vmem:[%s1 + $0x168] sm:$0xf]
    %v123 = vld [vmem:[%s1 + $0x16c] sm:$0xf]
    %v124 = vld [vmem:[%s1 + $0x170] sm:$0xf]
    %v125 = vld [vmem:[%s1 + $0x174] sm:$0xf]
    %v126 = vld [vmem:[%s1 + $0x178] sm:$0xf]
    %v127 = vld [vmem:[%s1 + $0x17c] sm:$0xf]
    %v128 = vld [vmem:[%s1 + $0x180] sm:$0xf]
    %v129 = vld [vmem:[%s1 + $0x184] sm:$0xf]
    %v130 = vld [vmem:[%s1 + $0x188] sm:$0xf]
    %v131 = vld [vmem:[%s1 + $0x18c] sm:$0xf]
    %v132 = vld [vmem:[%s1 + $0x190] sm:$0xf]
    %v133 = vld [vmem:[%s1 + $0x194] sm:$0xf]
    %v134 = vld [vmem:[%s1 + $0x198] sm:$0xf]
    %v135 = vld [vmem:[%s1 + $0x19c] sm:$0xf]
    %v136 = vld [vmem:[%s1 + $0x1a0] sm:$0xf]
    %v137 = vld [vmem:[%s1 + $0x1a4] sm:$0xf]
    %v138 = vld [vmem:[%s1 + $0x1a8] sm:$0xf]
    %v139 = vld [vmem:[%s1 + $0x1ac] sm:$0xf]
    %v140 = vld [vmem:[%s1 + $0x1b0] sm:$0xf]
    %v141 = vld [vmem:[%s1 + $0x1b4] sm:$0xf]
    %v142 = vld [vmem:[%s1 + $0x1b8] sm:$0xf]
    %v143 = vld [vmem:[%s1 + $0x1bc] sm:$0xf]
    %v144 = vld [vmem:[%s1 + $0x1c0] sm:$0xf]
    %v145 = vld [vmem:[%s1 + $0x1c4] sm:$0xf]
    %v146 = vld [vmem:[%s1 + $0x1c8] sm:$0xf]
    %v147 = vld [vmem:[%s1 + $0x1cc] sm:$0xf]
    %v148 = vld [vmem:[%s1 + $0x1d0] sm:$0xf]
    %v149 = vld [vmem:[%s1 + $0x1d4] sm:$0xf]
    %v150 = vld [vmem:[%s1 + $0x1d8] sm:$0xf]
    %v151 = vld [vmem:[%s1 + $0x1dc] sm:$0xf]
    %v152 = vld [vmem:[%s1 + $0x1e0] sm:$0xf]
    %v153 = vld [vmem:[%s1 + $0x1e4] sm:$0xf]
    %v154 = vld [vmem:[%s1 + $0x1e8] sm:$0xf]
    %v155 = vld [vmem:[%s1 + $0x1ec] sm:$0xf]
    %v156 = vld [vmem:[%s1 + $0x1f0] sm:$0xf]
    %v157 = vld [vmem:[%s1 + $0x1f4] sm:$0xf]
    %v158 = vld [vmem:[%s1 + $0x1f8] sm:$0xf]
    %v159 = vld [vmem:[%s1 + $0x1fc] sm:$0xf]
    %v160 = vld [vmem:[%s2] sm:$0x1]
    %v162 = vlaneseq
    %v163 = vshrl.u32 %v162, 7
    %v164 = vsub.s32 0, %v163
    %v165 = vrot.slane %v160, %v164
    %v171 = vunpack.c.l.b16 %v28
    %v172 = vunpack.c.h.b16 %v28
    %v173 = vunpack.c.l.b16 %v29
    %v174 = vunpack.c.h.b16 %v29
    %v175 = vunpack.c.l.b16 %v30
    %v176 = vunpack.c.h.b16 %v30
    %v177 = vunpack.c.l.b16 %v31
    %v178 = vunpack.c.h.b16 %v31
    %v179 = vpack.c.b16 %v171, %v171
    %v180 = vpack.c.b16 %v172, %v172
    %v181 = vpack.c.b16 %v173, %v173
    %v182 = vpack.c.b16 %v174, %v174
    %v183 = vpack.c.b16 %v175, %v175
    %v184 = vpack.c.b16 %v176, %v176
    %v185 = vpack.c.b16 %v177, %v177
    %v186 = vpack.c.b16 %v178, %v178
    %v323 = vunpack.c.l.b16 %v32
    %v324 = vunpack.c.l.b16 %v33
    %v325 = vunpack.c.l.b16 %v34
    %v326 = vunpack.c.l.b16 %v35
    %v327 = vunpack.c.l.b16 %v36
    %v328 = vunpack.c.l.b16 %v37
    %v329 = vunpack.c.l.b16 %v38
    %v330 = vunpack.c.l.b16 %v39
    %v331 = vunpack.c.l.b16 %v40
    %v332 = vunpack.c.l.b16 %v41
    %v333 = vunpack.c.l.b16 %v42
    %v334 = vunpack.c.l.b16 %v43
    %v335 = vunpack.c.l.b16 %v44
    %v336 = vunpack.c.l.b16 %v45
    %v337 = vunpack.c.l.b16 %v46
    %v338 = vunpack.c.l.b16 %v47
    %v339 = vunpack.c.l.b16 %v48
    %v340 = vunpack.c.l.b16 %v49
    %v341 = vunpack.c.l.b16 %v50
    %v342 = vunpack.c.l.b16 %v51
    %v343 = vunpack.c.l.b16 %v52
    %v344 = vunpack.c.l.b16 %v53
    %v345 = vunpack.c.l.b16 %v54
    %v346 = vunpack.c.l.b16 %v55
    %v347 = vunpack.c.l.b16 %v56
    %v348 = vunpack.c.l.b16 %v57
    %v349 = vunpack.c.l.b16 %v58
    %v350 = vunpack.c.l.b16 %v59
    %v351 = vunpack.c.l.b16 %v60
    %v352 = vunpack.c.l.b16 %v61
    %v353 = vunpack.c.l.b16 %v62
    %v354 = vunpack.c.l.b16 %v63
    %v355 = vunpack.c.l.b16 %v64
    %v356 = vunpack.c.l.b16 %v65
    %v357 = vunpack.c.l.b16 %v66
    %v358 = vunpack.c.l.b16 %v67
    %v359 = vunpack.c.l.b16 %v68
    %v360 = vunpack.c.l.b16 %v69
    %v361 = vunpack.c.l.b16 %v70
    %v362 = vunpack.c.l.b16 %v71
    %v363 = vunpack.c.l.b16 %v72
    %v364 = vunpack.c.l.b16 %v73
    %v365 = vunpack.c.l.b16 %v74
    %v366 = vunpack.c.l.b16 %v75
    %v367 = vunpack.c.l.b16 %v76
    %v368 = vunpack.c.l.b16 %v77
    %v369 = vunpack.c.l.b16 %v78
    %v370 = vunpack.c.l.b16 %v79
    %v371 = vunpack.c.l.b16 %v80
    %v372 = vunpack.c.l.b16 %v81
    %v373 = vunpack.c.l.b16 %v82
    %v374 = vunpack.c.l.b16 %v83
    %v375 = vunpack.c.l.b16 %v84
    %v376 = vunpack.c.l.b16 %v85
    %v377 = vunpack.c.l.b16 %v86
    %v378 = vunpack.c.l.b16 %v87
    %v379 = vunpack.c.l.b16 %v88
    %v380 = vunpack.c.l.b16 %v89
    %v381 = vunpack.c.l.b16 %v90
    %v382 = vunpack.c.l.b16 %v91
    %v383 = vunpack.c.l.b16 %v92
    %v384 = vunpack.c.l.b16 %v93
    %v385 = vunpack.c.l.b16 %v94
    %v386 = vunpack.c.l.b16 %v95
    %v387 = vunpack.c.l.b16 %v96
    %v388 = vunpack.c.l.b16 %v97
    %v389 = vunpack.c.l.b16 %v98
    %v390 = vunpack.c.l.b16 %v99
    %v391 = vunpack.c.l.b16 %v100
    %v392 = vunpack.c.l.b16 %v101
    %v393 = vunpack.c.l.b16 %v102
    %v394 = vunpack.c.l.b16 %v103
    %v395 = vunpack.c.l.b16 %v104
    %v396 = vunpack.c.l.b16 %v105
    %v397 = vunpack.c.l.b16 %v106
    %v398 = vunpack.c.l.b16 %v107
    %v399 = vunpack.c.l.b16 %v108
    %v400 = vunpack.c.l.b16 %v109
    %v401 = vunpack.c.l.b16 %v110
    %v402 = vunpack.c.l.b16 %v111
    %v403 = vunpack.c.l.b16 %v112
    %v404 = vunpack.c.l.b16 %v113
    %v405 = vunpack.c.l.b16 %v114
    %v406 = vunpack.c.l.b16 %v115
    %v407 = vunpack.c.l.b16 %v116
    %v408 = vunpack.c.l.b16 %v117
    %v409 = vunpack.c.l.b16 %v118
    %v410 = vunpack.c.l.b16 %v119
    %v411 = vunpack.c.l.b16 %v120
    %v412 = vunpack.c.l.b16 %v121
    %v413 = vunpack.c.l.b16 %v122
    %v414 = vunpack.c.l.b16 %v123
    %v415 = vunpack.c.l.b16 %v124
    %v416 = vunpack.c.l.b16 %v125
    %v417 = vunpack.c.l.b16 %v126
    %v418 = vunpack.c.l.b16 %v127
    %v419 = vunpack.c.l.b16 %v128
    %v420 = vunpack.c.l.b16 %v129
    %v421 = vunpack.c.l.b16 %v130
    %v422 = vunpack.c.l.b16 %v131
    %v423 = vunpack.c.l.b16 %v132
    %v424 = vunpack.c.l.b16 %v133
    %v425 = vunpack.c.l.b16 %v134
    %v426 = vunpack.c.l.b16 %v135
    %v427 = vunpack.c.l.b16 %v136
    %v428 = vunpack.c.l.b16 %v137
    %v429 = vunpack.c.l.b16 %v138
    %v430 = vunpack.c.l.b16 %v139
    %v431 = vunpack.c.l.b16 %v140
    %v432 = vunpack.c.l.b16 %v141
    %v433 = vunpack.c.l.b16 %v142
    %v434 = vunpack.c.l.b16 %v143
    %v435 = vunpack.c.l.b16 %v144
    %v436 = vunpack.c.l.b16 %v145
    %v437 = vunpack.c.l.b16 %v146
    %v438 = vunpack.c.l.b16 %v147
    %v439 = vunpack.c.l.b16 %v148
    %v440 = vunpack.c.l.b16 %v149
    %v441 = vunpack.c.l.b16 %v150
    %v442 = vunpack.c.l.b16 %v151
    %v443 = vunpack.c.l.b16 %v152
    %v444 = vunpack.c.l.b16 %v153
    %v445 = vunpack.c.l.b16 %v154
    %v446 = vunpack.c.l.b16 %v155
    %v447 = vunpack.c.l.b16 %v156
    %v448 = vunpack.c.l.b16 %v157
    %v449 = vunpack.c.l.b16 %v158
    %v450 = vunpack.c.l.b16 %v159
    %v451 = vpack.c.b16 %v324, %v323
    %v452 = vpack.c.b16 %v326, %v325
    %v453 = vpack.c.b16 %v328, %v327
    %v454 = vpack.c.b16 %v330, %v329
    %v455 = vpack.c.b16 %v332, %v331
    %v456 = vpack.c.b16 %v334, %v333
    %v457 = vpack.c.b16 %v336, %v335
    %v458 = vpack.c.b16 %v338, %v337
    %v459 = vpack.c.b16 %v340, %v339
    %v460 = vpack.c.b16 %v342, %v341
    %v461 = vpack.c.b16 %v344, %v343
    %v462 = vpack.c.b16 %v346, %v345
    %v463 = vpack.c.b16 %v348, %v347
    %v464 = vpack.c.b16 %v350, %v349
    %v465 = vpack.c.b16 %v352, %v351
    %v466 = vpack.c.b16 %v354, %v353
    %v467 = vpack.c.b16 %v356, %v355
    %v468 = vpack.c.b16 %v358, %v357
    %v469 = vpack.c.b16 %v360, %v359
    %v470 = vpack.c.b16 %v362, %v361
    %v471 = vpack.c.b16 %v364, %v363
    %v472 = vpack.c.b16 %v366, %v365
    %v473 = vpack.c.b16 %v368, %v367
    %v474 = vpack.c.b16 %v370, %v369
    %v475 = vpack.c.b16 %v372, %v371
    %v476 = vpack.c.b16 %v374, %v373
    %v477 = vpack.c.b16 %v376, %v375
    %v478 = vpack.c.b16 %v378, %v377
    %v479 = vpack.c.b16 %v380, %v379
    %v480 = vpack.c.b16 %v382, %v381
    %v481 = vpack.c.b16 %v384, %v383
    %v482 = vpack.c.b16 %v386, %v385
    %v483 = vpack.c.b16 %v388, %v387
    %v484 = vpack.c.b16 %v390, %v389
    %v485 = vpack.c.b16 %v392, %v391
    %v486 = vpack.c.b16 %v394, %v393
    %v487 = vpack.c.b16 %v396, %v395
    %v488 = vpack.c.b16 %v398, %v397
    %v489 = vpack.c.b16 %v400, %v399
    %v490 = vpack.c.b16 %v402, %v401
    %v491 = vpack.c.b16 %v404, %v403
    %v492 = vpack.c.b16 %v406, %v405
    %v493 = vpack.c.b16 %v408, %v407
    %v494 = vpack.c.b16 %v410, %v409
    %v495 = vpack.c.b16 %v412, %v411
    %v496 = vpack.c.b16 %v414, %v413
    %v497 = vpack.c.b16 %v416, %v415
    %v498 = vpack.c.b16 %v418, %v417
    %v499 = vpack.c.b16 %v420, %v419
    %v500 = vpack.c.b16 %v422, %v421
    %v501 = vpack.c.b16 %v424, %v423
    %v502 = vpack.c.b16 %v426, %v425
    %v503 = vpack.c.b16 %v428, %v427
    %v504 = vpack.c.b16 %v430, %v429
    %v505 = vpack.c.b16 %v432, %v431
    %v506 = vpack.c.b16 %v434, %v433
    %v507 = vpack.c.b16 %v436, %v435
    %v508 = vpack.c.b16 %v438, %v437
    %v509 = vpack.c.b16 %v440, %v439
    %v510 = vpack.c.b16 %v442, %v441
    %v511 = vpack.c.b16 %v444, %v443
    %v512 = vpack.c.b16 %v446, %v445
    %v513 = vpack.c.b16 %v448, %v447
    %v514 = vpack.c.b16 %v450, %v449
    %579 = vmatprep.subr.bf16.mxu0 0
    %580 = vmatpush1.bf16.msra.mxu0 %v451
    %581 = vmatprep.subr.bf16.mxu0 0
    %582 = vmatpush1.bf16.msra.mxu0 %v452
    %583 = vmatprep.subr.bf16.mxu0 0
    %584 = vmatpush1.bf16.msra.mxu0 %v453
    %585 = vmatprep.subr.bf16.mxu0 0
    %586 = vmatpush1.bf16.msra.mxu0 %v454
    %587 = vmatprep.subr.bf16.mxu0 0
    %588 = vmatpush1.bf16.msra.mxu0 %v455
    %589 = vmatprep.subr.bf16.mxu0 0
    %590 = vmatpush1.bf16.msra.mxu0 %v456
    %591 = vmatprep.subr.bf16.mxu0 0
    %592 = vmatpush1.bf16.msra.mxu0 %v457
    %593 = vmatprep.subr.bf16.mxu0 0
    %594 = vmatpush1.bf16.msra.mxu0 %v458
    %595 = vmatprep.subr.bf16.mxu0 0
    %596 = vmatpush1.bf16.msra.mxu0 %v459
    %597 = vmatprep.subr.bf16.mxu0 0
    %598 = vmatpush1.bf16.msra.mxu0 %v460
    %599 = vmatprep.subr.bf16.mxu0 0
    %600 = vmatpush1.bf16.msra.mxu0 %v461
    %601 = vmatprep.subr.bf16.mxu0 0
    %602 = vmatpush1.bf16.msra.mxu0 %v462
    %603 = vmatprep.subr.bf16.mxu0 0
    %604 = vmatpush1.bf16.msra.mxu0 %v463
    %605 = vmatprep.subr.bf16.mxu0 0
    %606 = vmatpush1.bf16.msra.mxu0 %v464
    %607 = vmatprep.subr.bf16.mxu0 0
    %608 = vmatpush1.bf16.msra.mxu0 %v465
    %609 = vmatprep.subr.bf16.mxu0 0
    %610 = vmatpush1.bf16.msra.mxu0 %v466
    %611 = vmatprep.mubr.bf16.mxu0 %v180
    %612 = vmatmul.mubr.bf16.gmra.mrb[0].mxu0 %v179
    %v613 = vpop.f32.mrb[0].mxu0
    %v614 = vadd.f32 %v165, %v613
    %v615 = vpop.f32.mrb[0].mxu0
    %v616 = vpop.f32.mrb[0].mxu0
    %v617 = vpop.f32.mrb[0].mxu0
    %618 = vdwg.mxu0
    %619 = vmatprep.subr.bf16.mxu0 0
    %620 = vmatpush1.bf16.msra.mxu0 %v467
    %621 = vmatprep.subr.bf16.mxu0 0
    %622 = vmatpush1.bf16.msra.mxu0 %v468
    %623 = vmatprep.subr.bf16.mxu0 0
    %624 = vmatpush1.bf16.msra.mxu0 %v469
    %625 = vmatprep.subr.bf16.mxu0 0
    %626 = vmatpush1.bf16.msra.mxu0 %v470
    %627 = vmatprep.subr.bf16.mxu0 0
    %628 = vmatpush1.bf16.msra.mxu0 %v471
    %629 = vmatprep.subr.bf16.mxu0 0
    %630 = vmatpush1.bf16.msra.mxu0 %v472
    %631 = vmatprep.subr.bf16.mxu0 0
    %632 = vmatpush1.bf16.msra.mxu0 %v473
    %633 = vmatprep.subr.bf16.mxu0 0
    %634 = vmatpush1.bf16.msra.mxu0 %v474
    %635 = vmatprep.subr.bf16.mxu0 0
    %636 = vmatpush1.bf16.msra.mxu0 %v475
    %637 = vmatprep.subr.bf16.mxu0 0
    %638 = vmatpush1.bf16.msra.mxu0 %v476
    %639 = vmatprep.subr.bf16.mxu0 0
    %640 = vmatpush1.bf16.msra.mxu0 %v477
    %641 = vmatprep.subr.bf16.mxu0 0
    %642 = vmatpush1.bf16.msra.mxu0 %v478
    %643 = vmatprep.subr.bf16.mxu0 0
    %644 = vmatpush1.bf16.msra.mxu0 %v479
    %645 = vmatprep.subr.bf16.mxu0 0
    %646 = vmatpush1.bf16.msra.mxu0 %v480
    %647 = vmatprep.subr.bf16.mxu0 0
    %648 = vmatpush1.bf16.msra.mxu0 %v481
    %649 = vmatprep.subr.bf16.mxu0 0
    %650 = vmatpush1.bf16.msra.mxu0 %v482
    %651 = vmatprep.mubr.bf16.mxu0 %v182
    %652 = vmatmul.mubr.bf16.gmra.mrb[0].mxu0 %v181
    %v653 = vpop.f32.mrb[0].mxu0
    %v654 = vadd.f32 %v614, %v653
    %v655 = vpop.f32.mrb[0].mxu0
    %v656 = vpop.f32.mrb[0].mxu0
    %v657 = vpop.f32.mrb[0].mxu0
    %658 = vdwg.mxu0
    %659 = vmatprep.subr.bf16.mxu0 0
    %660 = vmatpush1.bf16.msra.mxu0 %v483
    %661 = vmatprep.subr.bf16.mxu0 0
    %662 = vmatpush1.bf16.msra.mxu0 %v484
    %663 = vmatprep.subr.bf16.mxu0 0
    %664 = vmatpush1.bf16.msra.mxu0 %v485
    %665 = vmatprep.subr.bf16.mxu0 0
    %666 = vmatpush1.bf16.msra.mxu0 %v486
    %667 = vmatprep.subr.bf16.mxu0 0
    %668 = vmatpush1.bf16.msra.mxu0 %v487
    %669 = vmatprep.subr.bf16.mxu0 0
    %670 = vmatpush1.bf16.msra.mxu0 %v488
    %671 = vmatprep.subr.bf16.mxu0 0
    %672 = vmatpush1.bf16.msra.mxu0 %v489
    %673 = vmatprep.subr.bf16.mxu0 0
    %674 = vmatpush1.bf16.msra.mxu0 %v490
    %675 = vmatprep.subr.bf16.mxu0 0
    %676 = vmatpush1.bf16.msra.mxu0 %v491
    %677 = vmatprep.subr.bf16.mxu0 0
    %678 = vmatpush1.bf16.msra.mxu0 %v492
    %679 = vmatprep.subr.bf16.mxu0 0
    %680 = vmatpush1.bf16.msra.mxu0 %v493
    %681 = vmatprep.subr.bf16.mxu0 0
    %682 = vmatpush1.bf16.msra.mxu0 %v494
    %683 = vmatprep.subr.bf16.mxu0 0
    %684 = vmatpush1.bf16.msra.mxu0 %v495
    %685 = vmatprep.subr.bf16.mxu0 0
    %686 = vmatpush1.bf16.msra.mxu0 %v496
    %687 = vmatprep.subr.bf16.mxu0 0
    %688 = vmatpush1.bf16.msra.mxu0 %v497
    %689 = vmatprep.subr.bf16.mxu0 0
    %690 = vmatpush1.bf16.msra.mxu0 %v498
    %691 = vmatprep.mubr.bf16.mxu0 %v184
    %692 = vmatmul.mubr.bf16.gmra.mrb[0].mxu0 %v183
    %v693 = vpop.f32.mrb[0].mxu0
    %v694 = vadd.f32 %v654, %v693
    %v695 = vpop.f32.mrb[0].mxu0
    %v696 = vpop.f32.mrb[0].mxu0
    %v697 = vpop.f32.mrb[0].mxu0
    %698 = vdwg.mxu0
    %699 = vmatprep.subr.bf16.mxu0 0
    %700 = vmatpush1.bf16.msra.mxu0 %v499
    %701 = vmatprep.subr.bf16.mxu0 0
    %702 = vmatpush1.bf16.msra.mxu0 %v500
    %703 = vmatprep.subr.bf16.mxu0 0
    %704 = vmatpush1.bf16.msra.mxu0 %v501
    %705 = vmatprep.subr.bf16.mxu0 0
    %706 = vmatpush1.bf16.msra.mxu0 %v502
    %707 = vmatprep.subr.bf16.mxu0 0
    %708 = vmatpush1.bf16.msra.mxu0 %v503
    %709 = vmatprep.subr.bf16.mxu0 0
    %710 = vmatpush1.bf16.msra.mxu0 %v504
    %711 = vmatprep.subr.bf16.mxu0 0
    %712 = vmatpush1.bf16.msra.mxu0 %v505
    %713 = vmatprep.subr.bf16.mxu0 0
    %714 = vmatpush1.bf16.msra.mxu0 %v506
    %715 = vmatprep.subr.bf16.mxu0 0
    %716 = vmatpush1.bf16.msra.mxu0 %v507
    %717 = vmatprep.subr.bf16.mxu0 0
    %718 = vmatpush1.bf16.msra.mxu0 %v508
    %719 = vmatprep.subr.bf16.mxu0 0
    %720 = vmatpush1.bf16.msra.mxu0 %v509
    %721 = vmatprep.subr.bf16.mxu0 0
    %722 = vmatpush1.bf16.msra.mxu0 %v510
    %723 = vmatprep.subr.bf16.mxu0 0
    %724 = vmatpush1.bf16.msra.mxu0 %v511
    %725 = vmatprep.subr.bf16.mxu0 0
    %726 = vmatpush1.bf16.msra.mxu0 %v512
    %727 = vmatprep.subr.bf16.mxu0 0
    %728 = vmatpush1.bf16.msra.mxu0 %v513
    %729 = vmatprep.subr.bf16.mxu0 0
    %730 = vmatpush1.bf16.msra.mxu0 %v514
    %731 = vmatprep.mubr.bf16.mxu0 %v186
    %732 = vmatmul.mubr.bf16.gmra.mrb[0].mxu0 %v185
    %v733 = vpop.f32.mrb[0].mxu0
    %v734 = vadd.f32 %v694, %v733
    %v735 = vpop.f32.mrb[0].mxu0
    %v736 = vpop.f32.mrb[0].mxu0
    %v737 = vpop.f32.mrb[0].mxu0
    %738 = vdwg.mxu0
    %v739 = vmax.f32 %v734, 0.0
    %v740 = vpack.c.bf16 %v739, %v739
    %v741 = vld [vmem:[%s3] sm:$0xff]
    %v742 = vld [vmem:[%s3 + $0x8] sm:$0xff]
    %v743 = vld [vmem:[%s3 + $0x10] sm:$0xff]
    %v744 = vld [vmem:[%s3 + $0x18] sm:$0xff]
    %v745 = vld [vmem:[%s3 + $0x20] sm:$0xff]
    %v746 = vld [vmem:[%s3 + $0x28] sm:$0xff]
    %v747 = vld [vmem:[%s3 + $0x30] sm:$0xff]
    %v748 = vld [vmem:[%s3 + $0x38] sm:$0xff]
    %v749 = vld [vmem:[%s3 + $0x40] sm:$0xff]
    %v750 = vld [vmem:[%s3 + $0x48] sm:$0xff]
    %v751 = vld [vmem:[%s3 + $0x50] sm:$0xff]
    %v752 = vld [vmem:[%s3 + $0x58] sm:$0xff]
    %v753 = vld [vmem:[%s3 + $0x60] sm:$0xff]
    %v754 = vld [vmem:[%s3 + $0x68] sm:$0xff]
    %v755 = vld [vmem:[%s3 + $0x70] sm:$0xff]
    %v756 = vld [vmem:[%s3 + $0x78] sm:$0xff]
    %v757 = vld [vmem:[%s4] sm:$0x3]
    %v759 = vlaneseq
    %v760 = vshrl.u32 %v759, 7
    %v761 = vsub.s32 0, %v760
    %v762 = vrot.slane %v757, %v761
    %v763 = vlaneseq
    %v764 = vshrl.u32 %v763, 7
    %v765 = vsub.s32 1, %v764
    %v766 = vrot.slane %v757, %v765
    %v785 = vunpack.c.l.b16 %v741
    %v786 = vunpack.c.h.b16 %v741
    %v787 = vunpack.c.l.b16 %v742
    %v788 = vunpack.c.h.b16 %v742
    %v789 = vunpack.c.l.b16 %v743
    %v790 = vunpack.c.h.b16 %v743
    %v791 = vunpack.c.l.b16 %v744
    %v792 = vunpack.c.h.b16 %v744
    %v793 = vunpack.c.l.b16 %v745
    %v794 = vunpack.c.h.b16 %v745
    %v795 = vunpack.c.l.b16 %v746
    %v796 = vunpack.c.h.b16 %v746
    %v797 = vunpack.c.l.b16 %v747
    %v798 = vunpack.c.h.b16 %v747
    %v799 = vunpack.c.l.b16 %v748
    %v800 = vunpack.c.h.b16 %v748
    %v801 = vunpack.c.l.b16 %v749
    %v802 = vunpack.c.h.b16 %v749
    %v803 = vunpack.c.l.b16 %v750
    %v804 = vunpack.c.h.b16 %v750
    %v805 = vunpack.c.l.b16 %v751
    %v806 = vunpack.c.h.b16 %v751
    %v807 = vunpack.c.l.b16 %v752
    %v808 = vunpack.c.h.b16 %v752
    %v809 = vunpack.c.l.b16 %v753
    %v810 = vunpack.c.h.b16 %v753
    %v811 = vunpack.c.l.b16 %v754
    %v812 = vunpack.c.h.b16 %v754
    %v813 = vunpack.c.l.b16 %v755
    %v814 = vunpack.c.h.b16 %v755
    %v815 = vunpack.c.l.b16 %v756
    %v816 = vunpack.c.h.b16 %v756
    %v817 = vpack.c.b16 %v787, %v785
    %v818 = vpack.c.b16 %v788, %v786
    %v819 = vpack.c.b16 %v791, %v789
    %v820 = vpack.c.b16 %v792, %v790
    %v821 = vpack.c.b16 %v795, %v793
    %v822 = vpack.c.b16 %v796, %v794
    %v823 = vpack.c.b16 %v799, %v797
    %v824 = vpack.c.b16 %v800, %v798
    %v825 = vpack.c.b16 %v803, %v801
    %v826 = vpack.c.b16 %v804, %v802
    %v827 = vpack.c.b16 %v807, %v805
    %v828 = vpack.c.b16 %v808, %v806
    %v829 = vpack.c.b16 %v811, %v809
    %v830 = vpack.c.b16 %v812, %v810
    %v831 = vpack.c.b16 %v815, %v813
    %v832 = vpack.c.b16 %v816, %v814
    %849 = vmatprep.subr.bf16.mxu0 %v818
    %850 = vmatpush1.bf16.msra.mxu0 %v817
    %851 = vmatprep.subr.bf16.mxu0 %v820
    %852 = vmatpush1.bf16.msra.mxu0 %v819
    %853 = vmatprep.subr.bf16.mxu0 %v822
    %854 = vmatpush1.bf16.msra.mxu0 %v821
    %855 = vmatprep.subr.bf16.mxu0 %v824
    %856 = vmatpush1.bf16.msra.mxu0 %v823
    %857 = vmatprep.subr.bf16.mxu0 %v826
    %858 = vmatpush1.bf16.msra.mxu0 %v825
    %859 = vmatprep.subr.bf16.mxu0 %v828
    %860 = vmatpush1.bf16.msra.mxu0 %v827
    %861 = vmatprep.subr.bf16.mxu0 %v830
    %862 = vmatpush1.bf16.msra.mxu0 %v829
    %863 = vmatprep.subr.bf16.mxu0 %v832
    %864 = vmatpush1.bf16.msra.mxu0 %v831
    %865 = vmatprep.subr.bf16.mxu0 0
    %866 = vmatpush1.bf16.msra.mxu0 0
    %867 = vmatprep.subr.bf16.mxu0 0
    %868 = vmatpush1.bf16.msra.mxu0 0
    %869 = vmatprep.subr.bf16.mxu0 0
    %870 = vmatpush1.bf16.msra.mxu0 0
    %871 = vmatprep.subr.bf16.mxu0 0
    %872 = vmatpush1.bf16.msra.mxu0 0
    %873 = vmatprep.subr.bf16.mxu0 0
    %874 = vmatpush1.bf16.msra.mxu0 0
    %875 = vmatprep.subr.bf16.mxu0 0
    %876 = vmatpush1.bf16.msra.mxu0 0
    %877 = vmatprep.subr.bf16.mxu0 0
    %878 = vmatpush1.bf16.msra.mxu0 0
    %879 = vmatprep.subr.bf16.mxu0 0
    %880 = vmatpush1.bf16.msra.mxu0 0
    %881 = vmatprep.mubr.bf16.mxu0 0
    %882 = vmatmul.mubr.bf16.gmra.mrb[0].mxu0 %v740
    %v883 = vpop.f32.mrb[0].mxu0
    %v884 = vadd.f32 %v762, %v883
    %v885 = vpop.f32.mrb[0].mxu0
    %v886 = vadd.f32 %v766, %v885
    %v887 = vpop.f32.mrb[0].mxu0
    %v888 = vpop.f32.mrb[0].mxu0
    %889 = vdwg.mxu0
    %v890 = vmax.f32 %v884, 0.0
    %v891 = vmax.f32 %v886, 0.0
    %v892 = vpack.c.bf16 %v890, %v890
    %v893 = vpack.c.bf16 %v891, %v891
    %v894 = vld [vmem:[%s5] sm:$0xff]
    %v895 = vld [vmem:[%s5 + $0x8] sm:$0xff]
    %v896 = vld [vmem:[%s5 + $0x10] sm:$0xff]
    %v897 = vld [vmem:[%s5 + $0x18] sm:$0xff]
    %v898 = vld [vmem:[%s5 + $0x20] sm:$0xff]
    %v899 = vld [vmem:[%s5 + $0x28] sm:$0xff]
    %v900 = vld [vmem:[%s5 + $0x30] sm:$0xff]
    %v901 = vld [vmem:[%s5 + $0x38] sm:$0xff]
    %v902 = vld [vmem:[%s5 + $0x40] sm:$0xff]
    %v903 = vld [vmem:[%s5 + $0x48] sm:$0xff]
    %v904 = vld [vmem:[%s5 + $0x50] sm:$0xff]
    %v905 = vld [vmem:[%s5 + $0x58] sm:$0xff]
    %v906 = vld [vmem:[%s5 + $0x60] sm:$0xff]
    %v907 = vld [vmem:[%s5 + $0x68] sm:$0xff]
    %v908 = vld [vmem:[%s5 + $0x70] sm:$0xff]
    %v909 = vld [vmem:[%s5 + $0x78] sm:$0xff]
    %v910 = vld [vmem:[%s5 + $0x80] sm:$0xff]
    %v911 = vld [vmem:[%s5 + $0x88] sm:$0xff]
    %v912 = vld [vmem:[%s5 + $0x90] sm:$0xff]
    %v913 = vld [vmem:[%s5 + $0x98] sm:$0xff]
    %v914 = vld [vmem:[%s5 + $0xa0] sm:$0xff]
    %v915 = vld [vmem:[%s5 + $0xa8] sm:$0xff]
    %v916 = vld [vmem:[%s5 + $0xb0] sm:$0xff]
    %v917 = vld [vmem:[%s5 + $0xb8] sm:$0xff]
    %v918 = vld [vmem:[%s5 + $0xc0] sm:$0xff]
    %v919 = vld [vmem:[%s5 + $0xc8] sm:$0xff]
    %v920 = vld [vmem:[%s5 + $0xd0] sm:$0xff]
    %v921 = vld [vmem:[%s5 + $0xd8] sm:$0xff]
    %v922 = vld [vmem:[%s5 + $0xe0] sm:$0xff]
    %v923 = vld [vmem:[%s5 + $0xe8] sm:$0xff]
    %v924 = vld [vmem:[%s5 + $0xf0] sm:$0xff]
    %v925 = vld [vmem:[%s5 + $0xf8] sm:$0xff]
    %v926 = vld [vmem:[%s5 + $0x100] sm:$0xff]
    %v927 = vld [vmem:[%s5 + $0x108] sm:$0xff]
    %v928 = vld [vmem:[%s5 + $0x110] sm:$0xff]
    %v929 = vld [vmem:[%s5 + $0x118] sm:$0xff]
    %v930 = vld [vmem:[%s5 + $0x120] sm:$0xff]
    %v931 = vld [vmem:[%s5 + $0x128] sm:$0xff]
    %v932 = vld [vmem:[%s5 + $0x130] sm:$0xff]
    %v933 = vld [vmem:[%s5 + $0x138] sm:$0xff]
    %v934 = vld [vmem:[%s5 + $0x140] sm:$0xff]
    %v935 = vld [vmem:[%s5 + $0x148] sm:$0xff]
    %v936 = vld [vmem:[%s5 + $0x150] sm:$0xff]
    %v937 = vld [vmem:[%s5 + $0x158] sm:$0xff]
    %v938 = vld [vmem:[%s5 + $0x160] sm:$0xff]
    %v939 = vld [vmem:[%s5 + $0x168] sm:$0xff]
    %v940 = vld [vmem:[%s5 + $0x170] sm:$0xff]
    %v941 = vld [vmem:[%s5 + $0x178] sm:$0xff]
    %v942 = vld [vmem:[%s5 + $0x180] sm:$0xff]
    %v943 = vld [vmem:[%s5 + $0x188] sm:$0xff]
    %v944 = vld [vmem:[%s5 + $0x190] sm:$0xff]
    %v945 = vld [vmem:[%s5 + $0x198] sm:$0xff]
    %v946 = vld [vmem:[%s5 + $0x1a0] sm:$0xff]
    %v947 = vld [vmem:[%s5 + $0x1a8] sm:$0xff]
    %v948 = vld [vmem:[%s5 + $0x1b0] sm:$0xff]
    %v949 = vld [vmem:[%s5 + $0x1b8] sm:$0xff]
    %v950 = vld [vmem:[%s5 + $0x1c0] sm:$0xff]
    %v951 = vld [vmem:[%s5 + $0x1c8] sm:$0xff]
    %v952 = vld [vmem:[%s5 + $0x1d0] sm:$0xff]
    %v953 = vld [vmem:[%s5 + $0x1d8] sm:$0xff]
    %v954 = vld [vmem:[%s5 + $0x1e0] sm:$0xff]
    %v955 = vld [vmem:[%s5 + $0x1e8] sm:$0xff]
    %v956 = vld [vmem:[%s5 + $0x1f0] sm:$0xff]
    %v957 = vld [vmem:[%s5 + $0x1f8] sm:$0xff]
    %v958 = vld [vmem:[%s5 + $0x200] sm:$0xff]
    %v959 = vld [vmem:[%s5 + $0x208] sm:$0xff]
    %v960 = vld [vmem:[%s5 + $0x210] sm:$0xff]
    %v961 = vld [vmem:[%s5 + $0x218] sm:$0xff]
    %v962 = vld [vmem:[%s5 + $0x220] sm:$0xff]
    %v963 = vld [vmem:[%s5 + $0x228] sm:$0xff]
    %v964 = vld [vmem:[%s5 + $0x230] sm:$0xff]
    %v965 = vld [vmem:[%s5 + $0x238] sm:$0xff]
    %v966 = vld [vmem:[%s5 + $0x240] sm:$0xff]
    %v967 = vld [vmem:[%s5 + $0x248] sm:$0xff]
    %v968 = vld [vmem:[%s5 + $0x250] sm:$0xff]
    %v969 = vld [vmem:[%s5 + $0x258] sm:$0xff]
    %v970 = vld [vmem:[%s5 + $0x260] sm:$0xff]
    %v971 = vld [vmem:[%s5 + $0x268] sm:$0xff]
    %v972 = vld [vmem:[%s5 + $0x270] sm:$0xff]
    %v973 = vld [vmem:[%s5 + $0x278] sm:$0xff]
    %v974 = vld [vmem:[%s5 + $0x280] sm:$0xff]
    %v975 = vld [vmem:[%s5 + $0x288] sm:$0xff]
    %v976 = vld [vmem:[%s5 + $0x290] sm:$0xff]
    %v977 = vld [vmem:[%s5 + $0x298] sm:$0xff]
    %v978 = vld [vmem:[%s5 + $0x2a0] sm:$0xff]
    %v979 = vld [vmem:[%s5 + $0x2a8] sm:$0xff]
    %v980 = vld [vmem:[%s5 + $0x2b0] sm:$0xff]
    %v981 = vld [vmem:[%s5 + $0x2b8] sm:$0xff]
    %v982 = vld [vmem:[%s5 + $0x2c0] sm:$0xff]
    %v983 = vld [vmem:[%s5 + $0x2c8] sm:$0xff]
    %v984 = vld [vmem:[%s5 + $0x2d0] sm:$0xff]
    %v985 = vld [vmem:[%s5 + $0x2d8] sm:$0xff]
    %v986 = vld [vmem:[%s5 + $0x2e0] sm:$0xff]
    %v987 = vld [vmem:[%s5 + $0x2e8] sm:$0xff]
    %v988 = vld [vmem:[%s5 + $0x2f0] sm:$0xff]
    %v989 = vld [vmem:[%s5 + $0x2f8] sm:$0xff]
    %v990 = vld [vmem:[%s5 + $0x300] sm:$0xff]
    %v991 = vld [vmem:[%s5 + $0x308] sm:$0xff]
    %v992 = vld [vmem:[%s5 + $0x310] sm:$0xff]
    %v993 = vld [vmem:[%s5 + $0x318] sm:$0xff]
    %v994 = vld [vmem:[%s5 + $0x320] sm:$0xff]
    %v995 = vld [vmem:[%s5 + $0x328] sm:$0xff]
    %v996 = vld [vmem:[%s5 + $0x330] sm:$0xff]
    %v997 = vld [vmem:[%s5 + $0x338] sm:$0xff]
    %v998 = vld [vmem:[%s5 + $0x340] sm:$0xff]
    %v999 = vld [vmem:[%s5 + $0x348] sm:$0xff]
    %v1000 = vld [vmem:[%s5 + $0x350] sm:$0xff]
    %v1001 = vld [vmem:[%s5 + $0x358] sm:$0xff]
    %v1002 = vld [vmem:[%s5 + $0x360] sm:$0xff]
    %v1003 = vld [vmem:[%s5 + $0x368] sm:$0xff]
    %v1004 = vld [vmem:[%s5 + $0x370] sm:$0xff]
    %v1005 = vld [vmem:[%s5 + $0x378] sm:$0xff]
    %v1006 = vld [vmem:[%s5 + $0x380] sm:$0xff]
    %v1007 = vld [vmem:[%s5 + $0x388] sm:$0xff]
    %v1008 = vld [vmem:[%s5 + $0x390] sm:$0xff]
    %v1009 = vld [vmem:[%s5 + $0x398] sm:$0xff]
    %v1010 = vld [vmem:[%s5 + $0x3a0] sm:$0xff]
    %v1011 = vld [vmem:[%s5 + $0x3a8] sm:$0xff]
    %v1012 = vld [vmem:[%s5 + $0x3b0] sm:$0xff]
    %v1013 = vld [vmem:[%s5 + $0x3b8] sm:$0xff]
    %v1014 = vld [vmem:[%s5 + $0x3c0] sm:$0xff]
    %v1015 = vld [vmem:[%s5 + $0x3c8] sm:$0xff]
    %v1016 = vld [vmem:[%s5 + $0x3d0] sm:$0xff]
    %v1017 = vld [vmem:[%s5 + $0x3d8] sm:$0xff]
    %v1018 = vld [vmem:[%s5 + $0x3e0] sm:$0xff]
    %v1019 = vld [vmem:[%s5 + $0x3e8] sm:$0xff]
    %v1020 = vld [vmem:[%s5 + $0x3f0] sm:$0xff]
    %v1021 = vld [vmem:[%s5 + $0x3f8] sm:$0xff]
    %v1022 = vld [vmem:[%s6] sm:$0xff]
    %v1024 = vlaneseq
    %v1025 = vshrl.u32 %v1024, 7
    %v1026 = vsub.s32 0, %v1025
    %v1027 = vrot.slane %v1022, %v1026
    %v1028 = vlaneseq
    %v1029 = vshrl.u32 %v1028, 7
    %v1030 = vsub.s32 1, %v1029
    %v1031 = vrot.slane %v1022, %v1030
    %v1032 = vlaneseq
    %v1033 = vshrl.u32 %v1032, 7
    %v1034 = vsub.s32 2, %v1033
    %v1035 = vrot.slane %v1022, %v1034
    %v1036 = vlaneseq
    %v1037 = vshrl.u32 %v1036, 7
    %v1038 = vsub.s32 3, %v1037
    %v1039 = vrot.slane %v1022, %v1038
    %v1040 = vlaneseq
    %v1041 = vshrl.u32 %v1040, 7
    %v1042 = vsub.s32 4, %v1041
    %v1043 = vrot.slane %v1022, %v1042
    %v1044 = vlaneseq
    %v1045 = vshrl.u32 %v1044, 7
    %v1046 = vsub.s32 5, %v1045
    %v1047 = vrot.slane %v1022, %v1046
    %v1048 = vlaneseq
    %v1049 = vshrl.u32 %v1048, 7
    %v1050 = vsub.s32 6, %v1049
    %v1051 = vrot.slane %v1022, %v1050
    %v1052 = vlaneseq
    %v1053 = vshrl.u32 %v1052, 7
    %v1054 = vsub.s32 7, %v1053
    %v1055 = vrot.slane %v1022, %v1054
    %v1192 = vunpack.c.l.b16 %v894
    %v1193 = vunpack.c.h.b16 %v894
    %v1194 = vunpack.c.l.b16 %v895
    %v1195 = vunpack.c.h.b16 %v895
    %v1196 = vunpack.c.l.b16 %v896
    %v1197 = vunpack.c.h.b16 %v896
    %v1198 = vunpack.c.l.b16 %v897
    %v1199 = vunpack.c.h.b16 %v897
    %v1200 = vunpack.c.l.b16 %v898
    %v1201 = vunpack.c.h.b16 %v898
    %v1202 = vunpack.c.l.b16 %v899
    %v1203 = vunpack.c.h.b16 %v899
    %v1204 = vunpack.c.l.b16 %v900
    %v1205 = vunpack.c.h.b16 %v900
    %v1206 = vunpack.c.l.b16 %v901
    %v1207 = vunpack.c.h.b16 %v901
    %v1208 = vunpack.c.l.b16 %v902
    %v1209 = vunpack.c.h.b16 %v902
    %v1210 = vunpack.c.l.b16 %v903
    %v1211 = vunpack.c.h.b16 %v903
    %v1212 = vunpack.c.l.b16 %v904
    %v1213 = vunpack.c.h.b16 %v904
    %v1214 = vunpack.c.l.b16 %v905
    %v1215 = vunpack.c.h.b16 %v905
    %v1216 = vunpack.c.l.b16 %v906
    %v1217 = vunpack.c.h.b16 %v906
    %v1218 = vunpack.c.l.b16 %v907
    %v1219 = vunpack.c.h.b16 %v907
    %v1220 = vunpack.c.l.b16 %v908
    %v1221 = vunpack.c.h.b16 %v908
    %v1222 = vunpack.c.l.b16 %v909
    %v1223 = vunpack.c.h.b16 %v909
    %v1224 = vunpack.c.l.b16 %v910
    %v1225 = vunpack.c.h.b16 %v910
    %v1226 = vunpack.c.l.b16 %v911
    %v1227 = vunpack.c.h.b16 %v911
    %v1228 = vunpack.c.l.b16 %v912
    %v1229 = vunpack.c.h.b16 %v912
    %v1230 = vunpack.c.l.b16 %v913
    %v1231 = vunpack.c.h.b16 %v913
    %v1232 = vunpack.c.l.b16 %v914
    %v1233 = vunpack.c.h.b16 %v914
    %v1234 = vunpack.c.l.b16 %v915
    %v1235 = vunpack.c.h.b16 %v915
    %v1236 = vunpack.c.l.b16 %v916
    %v1237 = vunpack.c.h.b16 %v916
    %v1238 = vunpack.c.l.b16 %v917
    %v1239 = vunpack.c.h.b16 %v917
    %v1240 = vunpack.c.l.b16 %v918
    %v1241 = vunpack.c.h.b16 %v918
    %v1242 = vunpack.c.l.b16 %v919
    %v1243 = vunpack.c.h.b16 %v919
    %v1244 = vunpack.c.l.b16 %v920
    %v1245 = vunpack.c.h.b16 %v920
    %v1246 = vunpack.c.l.b16 %v921
    %v1247 = vunpack.c.h.b16 %v921
    %v1248 = vunpack.c.l.b16 %v922
    %v1249 = vunpack.c.h.b16 %v922
    %v1250 = vunpack.c.l.b16 %v923
    %v1251 = vunpack.c.h.b16 %v923
    %v1252 = vunpack.c.l.b16 %v924
    %v1253 = vunpack.c.h.b16 %v924
    %v1254 = vunpack.c.l.b16 %v925
    %v1255 = vunpack.c.h.b16 %v925
    %v1256 = vunpack.c.l.b16 %v926
    %v1257 = vunpack.c.h.b16 %v926
    %v1258 = vunpack.c.l.b16 %v927
    %v1259 = vunpack.c.h.b16 %v927
    %v1260 = vunpack.c.l.b16 %v928
    %v1261 = vunpack.c.h.b16 %v928
    %v1262 = vunpack.c.l.b16 %v929
    %v1263 = vunpack.c.h.b16 %v929
    %v1264 = vunpack.c.l.b16 %v930
    %v1265 = vunpack.c.h.b16 %v930
    %v1266 = vunpack.c.l.b16 %v931
    %v1267 = vunpack.c.h.b16 %v931
    %v1268 = vunpack.c.l.b16 %v932
    %v1269 = vunpack.c.h.b16 %v932
    %v1270 = vunpack.c.l.b16 %v933
    %v1271 = vunpack.c.h.b16 %v933
    %v1272 = vunpack.c.l.b16 %v934
    %v1273 = vunpack.c.h.b16 %v934
    %v1274 = vunpack.c.l.b16 %v935
    %v1275 = vunpack.c.h.b16 %v935
    %v1276 = vunpack.c.l.b16 %v936
    %v1277 = vunpack.c.h.b16 %v936
    %v1278 = vunpack.c.l.b16 %v937
    %v1279 = vunpack.c.h.b16 %v937
    %v1280 = vunpack.c.l.b16 %v938
    %v1281 = vunpack.c.h.b16 %v938
    %v1282 = vunpack.c.l.b16 %v939
    %v1283 = vunpack.c.h.b16 %v939
    %v1284 = vunpack.c.l.b16 %v940
    %v1285 = vunpack.c.h.b16 %v940
    %v1286 = vunpack.c.l.b16 %v941
    %v1287 = vunpack.c.h.b16 %v941
    %v1288 = vunpack.c.l.b16 %v942
    %v1289 = vunpack.c.h.b16 %v942
    %v1290 = vunpack.c.l.b16 %v943
    %v1291 = vunpack.c.h.b16 %v943
    %v1292 = vunpack.c.l.b16 %v944
    %v1293 = vunpack.c.h.b16 %v944
    %v1294 = vunpack.c.l.b16 %v945
    %v1295 = vunpack.c.h.b16 %v945
    %v1296 = vunpack.c.l.b16 %v946
    %v1297 = vunpack.c.h.b16 %v946
    %v1298 = vunpack.c.l.b16 %v947
    %v1299 = vunpack.c.h.b16 %v947
    %v1300 = vunpack.c.l.b16 %v948
    %v1301 = vunpack.c.h.b16 %v948
    %v1302 = vunpack.c.l.b16 %v949
    %v1303 = vunpack.c.h.b16 %v949
    %v1304 = vunpack.c.l.b16 %v950
    %v1305 = vunpack.c.h.b16 %v950
    %v1306 = vunpack.c.l.b16 %v951
    %v1307 = vunpack.c.h.b16 %v951
    %v1308 = vunpack.c.l.b16 %v952
    %v1309 = vunpack.c.h.b16 %v952
    %v1310 = vunpack.c.l.b16 %v953
    %v1311 = vunpack.c.h.b16 %v953
    %v1312 = vunpack.c.l.b16 %v954
    %v1313 = vunpack.c.h.b16 %v954
    %v1314 = vunpack.c.l.b16 %v955
    %v1315 = vunpack.c.h.b16 %v955
    %v1316 = vunpack.c.l.b16 %v956
    %v1317 = vunpack.c.h.b16 %v956
    %v1318 = vunpack.c.l.b16 %v957
    %v1319 = vunpack.c.h.b16 %v957
    %v1320 = vunpack.c.l.b16 %v958
    %v1321 = vunpack.c.h.b16 %v958
    %v1322 = vunpack.c.l.b16 %v959
    %v1323 = vunpack.c.h.b16 %v959
    %v1324 = vunpack.c.l.b16 %v960
    %v1325 = vunpack.c.h.b16 %v960
    %v1326 = vunpack.c.l.b16 %v961
    %v1327 = vunpack.c.h.b16 %v961
    %v1328 = vunpack.c.l.b16 %v962
    %v1329 = vunpack.c.h.b16 %v962
    %v1330 = vunpack.c.l.b16 %v963
    %v1331 = vunpack.c.h.b16 %v963
    %v1332 = vunpack.c.l.b16 %v964
    %v1333 = vunpack.c.h.b16 %v964
    %v1334 = vunpack.c.l.b16 %v965
    %v1335 = vunpack.c.h.b16 %v965
    %v1336 = vunpack.c.l.b16 %v966
    %v1337 = vunpack.c.h.b16 %v966
    %v1338 = vunpack.c.l.b16 %v967
    %v1339 = vunpack.c.h.b16 %v967
    %v1340 = vunpack.c.l.b16 %v968
    %v1341 = vunpack.c.h.b16 %v968
    %v1342 = vunpack.c.l.b16 %v969
    %v1343 = vunpack.c.h.b16 %v969
    %v1344 = vunpack.c.l.b16 %v970
    %v1345 = vunpack.c.h.b16 %v970
    %v1346 = vunpack.c.l.b16 %v971
    %v1347 = vunpack.c.h.b16 %v971
    %v1348 = vunpack.c.l.b16 %v972
    %v1349 = vunpack.c.h.b16 %v972
    %v1350 = vunpack.c.l.b16 %v973
    %v1351 = vunpack.c.h.b16 %v973
    %v1352 = vunpack.c.l.b16 %v974
    %v1353 = vunpack.c.h.b16 %v974
    %v1354 = vunpack.c.l.b16 %v975
    %v1355 = vunpack.c.h.b16 %v975
    %v1356 = vunpack.c.l.b16 %v976
    %v1357 = vunpack.c.h.b16 %v976
    %v1358 = vunpack.c.l.b16 %v977
    %v1359 = vunpack.c.h.b16 %v977
    %v1360 = vunpack.c.l.b16 %v978
    %v1361 = vunpack.c.h.b16 %v978
    %v1362 = vunpack.c.l.b16 %v979
    %v1363 = vunpack.c.h.b16 %v979
    %v1364 = vunpack.c.l.b16 %v980
    %v1365 = vunpack.c.h.b16 %v980
    %v1366 = vunpack.c.l.b16 %v981
    %v1367 = vunpack.c.h.b16 %v981
    %v1368 = vunpack.c.l.b16 %v982
    %v1369 = vunpack.c.h.b16 %v982
    %v1370 = vunpack.c.l.b16 %v983
    %v1371 = vunpack.c.h.b16 %v983
    %v1372 = vunpack.c.l.b16 %v984
    %v1373 = vunpack.c.h.b16 %v984
    %v1374 = vunpack.c.l.b16 %v985
    %v1375 = vunpack.c.h.b16 %v985
    %v1376 = vunpack.c.l.b16 %v986
    %v1377 = vunpack.c.h.b16 %v986
    %v1378 = vunpack.c.l.b16 %v987
    %v1379 = vunpack.c.h.b16 %v987
    %v1380 = vunpack.c.l.b16 %v988
    %v1381 = vunpack.c.h.b16 %v988
    %v1382 = vunpack.c.l.b16 %v989
    %v1383 = vunpack.c.h.b16 %v989
    %v1384 = vunpack.c.l.b16 %v990
    %v1385 = vunpack.c.h.b16 %v990
    %v1386 = vunpack.c.l.b16 %v991
    %v1387 = vunpack.c.h.b16 %v991
    %v1388 = vunpack.c.l.b16 %v992
    %v1389 = vunpack.c.h.b16 %v992
    %v1390 = vunpack.c.l.b16 %v993
    %v1391 = vunpack.c.h.b16 %v993
    %v1392 = vunpack.c.l.b16 %v994
    %v1393 = vunpack.c.h.b16 %v994
    %v1394 = vunpack.c.l.b16 %v995
    %v1395 = vunpack.c.h.b16 %v995
    %v1396 = vunpack.c.l.b16 %v996
    %v1397 = vunpack.c.h.b16 %v996
    %v1398 = vunpack.c.l.b16 %v997
    %v1399 = vunpack.c.h.b16 %v997
    %v1400 = vunpack.c.l.b16 %v998
    %v1401 = vunpack.c.h.b16 %v998
    %v1402 = vunpack.c.l.b16 %v999
    %v1403 = vunpack.c.h.b16 %v999
    %v1404 = vunpack.c.l.b16 %v1000
    %v1405 = vunpack.c.h.b16 %v1000
    %v1406 = vunpack.c.l.b16 %v1001
    %v1407 = vunpack.c.h.b16 %v1001
    %v1408 = vunpack.c.l.b16 %v1002
    %v1409 = vunpack.c.h.b16 %v1002
    %v1410 = vunpack.c.l.b16 %v1003
    %v1411 = vunpack.c.h.b16 %v1003
    %v1412 = vunpack.c.l.b16 %v1004
    %v1413 = vunpack.c.h.b16 %v1004
    %v1414 = vunpack.c.l.b16 %v1005
    %v1415 = vunpack.c.h.b16 %v1005
    %v1416 = vunpack.c.l.b16 %v1006
    %v1417 = vunpack.c.h.b16 %v1006
    %v1418 = vunpack.c.l.b16 %v1007
    %v1419 = vunpack.c.h.b16 %v1007
    %v1420 = vunpack.c.l.b16 %v1008
    %v1421 = vunpack.c.h.b16 %v1008
    %v1422 = vunpack.c.l.b16 %v1009
    %v1423 = vunpack.c.h.b16 %v1009
    %v1424 = vunpack.c.l.b16 %v1010
    %v1425 = vunpack.c.h.b16 %v1010
    %v1426 = vunpack.c.l.b16 %v1011
    %v1427 = vunpack.c.h.b16 %v1011
    %v1428 = vunpack.c.l.b16 %v1012
    %v1429 = vunpack.c.h.b16 %v1012
    %v1430 = vunpack.c.l.b16 %v1013
    %v1431 = vunpack.c.h.b16 %v1013
    %v1432 = vunpack.c.l.b16 %v1014
    %v1433 = vunpack.c.h.b16 %v1014
    %v1434 = vunpack.c.l.b16 %v1015
    %v1435 = vunpack.c.h.b16 %v1015
    %v1436 = vunpack.c.l.b16 %v1016
    %v1437 = vunpack.c.h.b16 %v1016
    %v1438 = vunpack.c.l.b16 %v1017
    %v1439 = vunpack.c.h.b16 %v1017
    %v1440 = vunpack.c.l.b16 %v1018
    %v1441 = vunpack.c.h.b16 %v1018
    %v1442 = vunpack.c.l.b16 %v1019
    %v1443 = vunpack.c.h.b16 %v1019
    %v1444 = vunpack.c.l.b16 %v1020
    %v1445 = vunpack.c.h.b16 %v1020
    %v1446 = vunpack.c.l.b16 %v1021
    %v1447 = vunpack.c.h.b16 %v1021
    %v1448 = vpack.c.b16 %v1200, %v1192
    %v1449 = vpack.c.b16 %v1201, %v1193
    %v1450 = vpack.c.b16 %v1202, %v1194
    %v1451 = vpack.c.b16 %v1203, %v1195
    %v1452 = vpack.c.b16 %v1204, %v1196
    %v1453 = vpack.c.b16 %v1205, %v1197
    %v1454 = vpack.c.b16 %v1206, %v1198
    %v1455 = vpack.c.b16 %v1207, %v1199
    %v1456 = vpack.c.b16 %v1216, %v1208
    %v1457 = vpack.c.b16 %v1217, %v1209
    %v1458 = vpack.c.b16 %v1218, %v1210
    %v1459 = vpack.c.b16 %v1219, %v1211
    %v1460 = vpack.c.b16 %v1220, %v1212
    %v1461 = vpack.c.b16 %v1221, %v1213
    %v1462 = vpack.c.b16 %v1222, %v1214
    %v1463 = vpack.c.b16 %v1223, %v1215
    %v1464 = vpack.c.b16 %v1232, %v1224
    %v1465 = vpack.c.b16 %v1233, %v1225
    %v1466 = vpack.c.b16 %v1234, %v1226
    %v1467 = vpack.c.b16 %v1235, %v1227
    %v1468 = vpack.c.b16 %v1236, %v1228
    %v1469 = vpack.c.b16 %v1237, %v1229
    %v1470 = vpack.c.b16 %v1238, %v1230
    %v1471 = vpack.c.b16 %v1239, %v1231
    %v1472 = vpack.c.b16 %v1248, %v1240
    %v1473 = vpack.c.b16 %v1249, %v1241
    %v1474 = vpack.c.b16 %v1250, %v1242
    %v1475 = vpack.c.b16 %v1251, %v1243
    %v1476 = vpack.c.b16 %v1252, %v1244
    %v1477 = vpack.c.b16 %v1253, %v1245
    %v1478 = vpack.c.b16 %v1254, %v1246
    %v1479 = vpack.c.b16 %v1255, %v1247
    %v1480 = vpack.c.b16 %v1264, %v1256
    %v1481 = vpack.c.b16 %v1265, %v1257
    %v1482 = vpack.c.b16 %v1266, %v1258
    %v1483 = vpack.c.b16 %v1267, %v1259
    %v1484 = vpack.c.b16 %v1268, %v1260
    %v1485 = vpack.c.b16 %v1269, %v1261
    %v1486 = vpack.c.b16 %v1270, %v1262
    %v1487 = vpack.c.b16 %v1271, %v1263
    %v1488 = vpack.c.b16 %v1280, %v1272
    %v1489 = vpack.c.b16 %v1281, %v1273
    %v1490 = vpack.c.b16 %v1282, %v1274
    %v1491 = vpack.c.b16 %v1283, %v1275
    %v1492 = vpack.c.b16 %v1284, %v1276
    %v1493 = vpack.c.b16 %v1285, %v1277
    %v1494 = vpack.c.b16 %v1286, %v1278
    %v1495 = vpack.c.b16 %v1287, %v1279
    %v1496 = vpack.c.b16 %v1296, %v1288
    %v1497 = vpack.c.b16 %v1297, %v1289
    %v1498 = vpack.c.b16 %v1298, %v1290
    %v1499 = vpack.c.b16 %v1299, %v1291
    %v1500 = vpack.c.b16 %v1300, %v1292
    %v1501 = vpack.c.b16 %v1301, %v1293
    %v1502 = vpack.c.b16 %v1302, %v1294
    %v1503 = vpack.c.b16 %v1303, %v1295
    %v1504 = vpack.c.b16 %v1312, %v1304
    %v1505 = vpack.c.b16 %v1313, %v1305
    %v1506 = vpack.c.b16 %v1314, %v1306
    %v1507 = vpack.c.b16 %v1315, %v1307
    %v1508 = vpack.c.b16 %v1316, %v1308
    %v1509 = vpack.c.b16 %v1317, %v1309
    %v1510 = vpack.c.b16 %v1318, %v1310
    %v1511 = vpack.c.b16 %v1319, %v1311
    %v1512 = vpack.c.b16 %v1328, %v1320
    %v1513 = vpack.c.b16 %v1329, %v1321
    %v1514 = vpack.c.b16 %v1330, %v1322
    %v1515 = vpack.c.b16 %v1331, %v1323
    %v1516 = vpack.c.b16 %v1332, %v1324
    %v1517 = vpack.c.b16 %v1333, %v1325
    %v1518 = vpack.c.b16 %v1334, %v1326
    %v1519 = vpack.c.b16 %v1335, %v1327
    %v1520 = vpack.c.b16 %v1344, %v1336
    %v1521 = vpack.c.b16 %v1345, %v1337
    %v1522 = vpack.c.b16 %v1346, %v1338
    %v1523 = vpack.c.b16 %v1347, %v1339
    %v1524 = vpack.c.b16 %v1348, %v1340
    %v1525 = vpack.c.b16 %v1349, %v1341
    %v1526 = vpack.c.b16 %v1350, %v1342
    %v1527 = vpack.c.b16 %v1351, %v1343
    %v1528 = vpack.c.b16 %v1360, %v1352
    %v1529 = vpack.c.b16 %v1361, %v1353
    %v1530 = vpack.c.b16 %v1362, %v1354
    %v1531 = vpack.c.b16 %v1363, %v1355
    %v1532 = vpack.c.b16 %v1364, %v1356
    %v1533 = vpack.c.b16 %v1365, %v1357
    %v1534 = vpack.c.b16 %v1366, %v1358
    %v1535 = vpack.c.b16 %v1367, %v1359
    %v1536 = vpack.c.b16 %v1376, %v1368
    %v1537 = vpack.c.b16 %v1377, %v1369
    %v1538 = vpack.c.b16 %v1378, %v1370
    %v1539 = vpack.c.b16 %v1379, %v1371
    %v1540 = vpack.c.b16 %v1380, %v1372
    %v1541 = vpack.c.b16 %v1381, %v1373
    %v1542 = vpack.c.b16 %v1382, %v1374
    %v1543 = vpack.c.b16 %v1383, %v1375
    %v1544 = vpack.c.b16 %v1392, %v1384
    %v1545 = vpack.c.b16 %v1393, %v1385
    %v1546 = vpack.c.b16 %v1394, %v1386
    %v1547 = vpack.c.b16 %v1395, %v1387
    %v1548 = vpack.c.b16 %v1396, %v1388
    %v1549 = vpack.c.b16 %v1397, %v1389
    %v1550 = vpack.c.b16 %v1398, %v1390
    %v1551 = vpack.c.b16 %v1399, %v1391
    %v1552 = vpack.c.b16 %v1408, %v1400
    %v1553 = vpack.c.b16 %v1409, %v1401
    %v1554 = vpack.c.b16 %v1410, %v1402
    %v1555 = vpack.c.b16 %v1411, %v1403
    %v1556 = vpack.c.b16 %v1412, %v1404
    %v1557 = vpack.c.b16 %v1413, %v1405
    %v1558 = vpack.c.b16 %v1414, %v1406
    %v1559 = vpack.c.b16 %v1415, %v1407
    %v1560 = vpack.c.b16 %v1424, %v1416
    %v1561 = vpack.c.b16 %v1425, %v1417
    %v1562 = vpack.c.b16 %v1426, %v1418
    %v1563 = vpack.c.b16 %v1427, %v1419
    %v1564 = vpack.c.b16 %v1428, %v1420
    %v1565 = vpack.c.b16 %v1429, %v1421
    %v1566 = vpack.c.b16 %v1430, %v1422
    %v1567 = vpack.c.b16 %v1431, %v1423
    %v1568 = vpack.c.b16 %v1440, %v1432
    %v1569 = vpack.c.b16 %v1441, %v1433
    %v1570 = vpack.c.b16 %v1442, %v1434
    %v1571 = vpack.c.b16 %v1443, %v1435
    %v1572 = vpack.c.b16 %v1444, %v1436
    %v1573 = vpack.c.b16 %v1445, %v1437
    %v1574 = vpack.c.b16 %v1446, %v1438
    %v1575 = vpack.c.b16 %v1447, %v1439
    %1704 = vmatprep.subr.bf16.mxu0 %v1449
    %1705 = vmatpush1.bf16.msra.mxu0 %v1448
    %1706 = vmatprep.subr.bf16.mxu0 %v1457
    %1707 = vmatpush1.bf16.msra.mxu0 %v1456
    %1708 = vmatprep.subr.bf16.mxu0 %v1465
    %1709 = vmatpush1.bf16.msra.mxu0 %v1464
    %1710 = vmatprep.subr.bf16.mxu0 %v1473
    %1711 = vmatpush1.bf16.msra.mxu0 %v1472
    %1712 = vmatprep.subr.bf16.mxu0 %v1481
    %1713 = vmatpush1.bf16.msra.mxu0 %v1480
    %1714 = vmatprep.subr.bf16.mxu0 %v1489
    %1715 = vmatpush1.bf16.msra.mxu0 %v1488
    %1716 = vmatprep.subr.bf16.mxu0 %v1497
    %1717 = vmatpush1.bf16.msra.mxu0 %v1496
    %1718 = vmatprep.subr.bf16.mxu0 %v1505
    %1719 = vmatpush1.bf16.msra.mxu0 %v1504
    %1720 = vmatprep.subr.bf16.mxu0 %v1513
    %1721 = vmatpush1.bf16.msra.mxu0 %v1512
    %1722 = vmatprep.subr.bf16.mxu0 %v1521
    %1723 = vmatpush1.bf16.msra.mxu0 %v1520
    %1724 = vmatprep.subr.bf16.mxu0 %v1529
    %1725 = vmatpush1.bf16.msra.mxu0 %v1528
    %1726 = vmatprep.subr.bf16.mxu0 %v1537
    %1727 = vmatpush1.bf16.msra.mxu0 %v1536
    %1728 = vmatprep.subr.bf16.mxu0 %v1545
    %1729 = vmatpush1.bf16.msra.mxu0 %v1544
    %1730 = vmatprep.subr.bf16.mxu0 %v1553
    %1731 = vmatpush1.bf16.msra.mxu0 %v1552
    %1732 = vmatprep.subr.bf16.mxu0 %v1561
    %1733 = vmatpush1.bf16.msra.mxu0 %v1560
    %1734 = vmatprep.subr.bf16.mxu0 %v1569
    %1735 = vmatpush1.bf16.msra.mxu0 %v1568
    %1736 = vmatprep.mubr.bf16.mxu0 %v893
    %1737 = vmatmul.mubr.bf16.gmra.mrb[0].mxu0 %v892
    %v1738 = vpop.f32.mrb[0].mxu0
    %v1739 = vadd.f32 %v1027, %v1738
    %v1740 = vpop.f32.mrb[0].mxu0
    %v1741 = vadd.f32 %v1031, %v1740
    %v1742 = vpop.f32.mrb[0].mxu0
    %v1743 = vpop.f32.mrb[0].mxu0
    %1744 = vdwg.mxu0
    %1745 = vmatprep.subr.bf16.mxu0 %v1451
    %1746 = vmatpush1.bf16.msra.mxu0 %v1450
    %1747 = vmatprep.subr.bf16.mxu0 %v1459
    %1748 = vmatpush1.bf16.msra.mxu0 %v1458
    %1749 = vmatprep.subr.bf16.mxu0 %v1467
    %1750 = vmatpush1.bf16.msra.mxu0 %v1466
    %1751 = vmatprep.subr.bf16.mxu0 %v1475
    %1752 = vmatpush1.bf16.msra.mxu0 %v1474
    %1753 = vmatprep.subr.bf16.mxu0 %v1483
    %1754 = vmatpush1.bf16.msra.mxu0 %v1482
    %1755 = vmatprep.subr.bf16.mxu0 %v1491
    %1756 = vmatpush1.bf16.msra.mxu0 %v1490
    %1757 = vmatprep.subr.bf16.mxu0 %v1499
    %1758 = vmatpush1.bf16.msra.mxu0 %v1498
    %1759 = vmatprep.subr.bf16.mxu0 %v1507
    %1760 = vmatpush1.bf16.msra.mxu0 %v1506
    %1761 = vmatprep.subr.bf16.mxu0 %v1515
    %1762 = vmatpush1.bf16.msra.mxu0 %v1514
    %1763 = vmatprep.subr.bf16.mxu0 %v1523
    %1764 = vmatpush1.bf16.msra.mxu0 %v1522
    %1765 = vmatprep.subr.bf16.mxu0 %v1531
    %1766 = vmatpush1.bf16.msra.mxu0 %v1530
    %1767 = vmatprep.subr.bf16.mxu0 %v1539
    %1768 = vmatpush1.bf16.msra.mxu0 %v1538
    %1769 = vmatprep.subr.bf16.mxu0 %v1547
    %1770 = vmatpush1.bf16.msra.mxu0 %v1546
    %1771 = vmatprep.subr.bf16.mxu0 %v1555
    %1772 = vmatpush1.bf16.msra.mxu0 %v1554
    %1773 = vmatprep.subr.bf16.mxu0 %v1563
    %1774 = vmatpush1.bf16.msra.mxu0 %v1562
    %1775 = vmatprep.subr.bf16.mxu0 %v1571
    %1776 = vmatpush1.bf16.msra.mxu0 %v1570
    %1777 = vmatprep.mubr.bf16.mxu0 %v893
    %1778 = vmatmul.mubr.bf16.gmra.mrb[0].mxu0 %v892
    %v1779 = vpop.f32.mrb[0].mxu0
    %v1780 = vadd.f32 %v1035, %v1779
    %v1781 = vpop.f32.mrb[0].mxu0
    %v1782 = vadd.f32 %v1039, %v1781
    %v1783 = vpop.f32.mrb[0].mxu0
    %v1784 = vpop.f32.mrb[0].mxu0
    %1785 = vdwg.mxu0
    %1786 = vmatprep.subr.bf16.mxu0 %v1453
    %1787 = vmatpush1.bf16.msra.mxu0 %v1452
    %1788 = vmatprep.subr.bf16.mxu0 %v1461
    %1789 = vmatpush1.bf16.msra.mxu0 %v1460
    %1790 = vmatprep.subr.bf16.mxu0 %v1469
    %1791 = vmatpush1.bf16.msra.mxu0 %v1468
    %1792 = vmatprep.subr.bf16.mxu0 %v1477
    %1793 = vmatpush1.bf16.msra.mxu0 %v1476
    %1794 = vmatprep.subr.bf16.mxu0 %v1485
    %1795 = vmatpush1.bf16.msra.mxu0 %v1484
    %1796 = vmatprep.subr.bf16.mxu0 %v1493
    %1797 = vmatpush1.bf16.msra.mxu0 %v1492
    %1798 = vmatprep.subr.bf16.mxu0 %v1501
    %1799 = vmatpush1.bf16.msra.mxu0 %v1500
    %1800 = vmatprep.subr.bf16.mxu0 %v1509
    %1801 = vmatpush1.bf16.msra.mxu0 %v1508
    %1802 = vmatprep.subr.bf16.mxu0 %v1517
    %1803 = vmatpush1.bf16.msra.mxu0 %v1516
    %1804 = vmatprep.subr.bf16.mxu0 %v1525
    %1805 = vmatpush1.bf16.msra.mxu0 %v1524
    %1806 = vmatprep.subr.bf16.mxu0 %v1533
    %1807 = vmatpush1.bf16.msra.mxu0 %v1532
    %1808 = vmatprep.subr.bf16.mxu0 %v1541
    %1809 = vmatpush1.bf16.msra.mxu0 %v1540
    %1810 = vmatprep.subr.bf16.mxu0 %v1549
    %1811 = vmatpush1.bf16.msra.mxu0 %v1548
    %1812 = vmatprep.subr.bf16.mxu0 %v1557
    %1813 = vmatpush1.bf16.msra.mxu0 %v1556
    %1814 = vmatprep.subr.bf16.mxu0 %v1565
    %1815 = vmatpush1.bf16.msra.mxu0 %v1564
    %1816 = vmatprep.subr.bf16.mxu0 %v1573
    %1817 = vmatpush1.bf16.msra.mxu0 %v1572
    %1818 = vmatprep.mubr.bf16.mxu0 %v893
    %1819 = vmatmul.mubr.bf16.gmra.mrb[0].mxu0 %v892
    %v1820 = vpop.f32.mrb[0].mxu0
    %v1821 = vadd.f32 %v1043, %v1820
    %v1822 = vpop.f32.mrb[0].mxu0
    %v1823 = vadd.f32 %v1047, %v1822
    %v1824 = vpop.f32.mrb[0].mxu0
    %v1825 = vpop.f32.mrb[0].mxu0
    %1826 = vdwg.mxu0
    %1827 = vmatprep.subr.bf16.mxu0 %v1455
    %1828 = vmatpush1.bf16.msra.mxu0 %v1454
    %1829 = vmatprep.subr.bf16.mxu0 %v1463
    %1830 = vmatpush1.bf16.msra.mxu0 %v1462
    %1831 = vmatprep.subr.bf16.mxu0 %v1471
    %1832 = vmatpush1.bf16.msra.mxu0 %v1470
    %1833 = vmatprep.subr.bf16.mxu0 %v1479
    %1834 = vmatpush1.bf16.msra.mxu0 %v1478
    %1835 = vmatprep.subr.bf16.mxu0 %v1487
    %1836 = vmatpush1.bf16.msra.mxu0 %v1486
    %1837 = vmatprep.subr.bf16.mxu0 %v1495
    %1838 = vmatpush1.bf16.msra.mxu0 %v1494
    %1839 = vmatprep.subr.bf16.mxu0 %v1503
    %1840 = vmatpush1.bf16.msra.mxu0 %v1502
    %1841 = vmatprep.subr.bf16.mxu0 %v1511
    %1842 = vmatpush1.bf16.msra.mxu0 %v1510
    %1843 = vmatprep.subr.bf16.mxu0 %v1519
    %1844 = vmatpush1.bf16.msra.mxu0 %v1518
    %1845 = vmatprep.subr.bf16.mxu0 %v1527
    %1846 = vmatpush1.bf16.msra.mxu0 %v1526
    %1847 = vmatprep.subr.bf16.mxu0 %v1535
    %1848 = vmatpush1.bf16.msra.mxu0 %v1534
    %1849 = vmatprep.subr.bf16.mxu0 %v1543
    %1850 = vmatpush1.bf16.msra.mxu0 %v1542
    %1851 = vmatprep.subr.bf16.mxu0 %v1551
    %1852 = vmatpush1.bf16.msra.mxu0 %v1550
    %1853 = vmatprep.subr.bf16.mxu0 %v1559
    %1854 = vmatpush1.bf16.msra.mxu0 %v1558
    %1855 = vmatprep.subr.bf16.mxu0 %v1567
    %1856 = vmatpush1.bf16.msra.mxu0 %v1566
    %1857 = vmatprep.subr.bf16.mxu0 %v1575
    %1858 = vmatpush1.bf16.msra.mxu0 %v1574
    %1859 = vmatprep.mubr.bf16.mxu0 %v893
    %1860 = vmatmul.mubr.bf16.gmra.mrb[0].mxu0 %v892
    %v1861 = vpop.f32.mrb[0].mxu0
    %v1862 = vadd.f32 %v1051, %v1861
    %v1863 = vpop.f32.mrb[0].mxu0
    %v1864 = vadd.f32 %v1055, %v1863
    %v1865 = vpop.f32.mrb[0].mxu0
    %v1866 = vpop.f32.mrb[0].mxu0
    %1867 = vdwg.mxu0
    %1868 = vst [vmem:[#allocation2] sm:$0xff] %v1739
    %1869 = vst [vmem:[#allocation2 + $0x8] sm:$0xff] %v1741
    %1870 = vst [vmem:[#allocation2 + $0x10] sm:$0xff] %v1780
    %1871 = vst [vmem:[#allocation2 + $0x18] sm:$0xff] %v1782
    %1872 = vst [vmem:[#allocation2 + $0x20] sm:$0xff] %v1821
    %1873 = vst [vmem:[#allocation2 + $0x28] sm:$0xff] %v1823
    %1874 = vst [vmem:[#allocation2 + $0x30] sm:$0xff] %v1862
    %1875 = vst [vmem:[#allocation2 + $0x38] sm:$0xff] %v1864
    // Predicated region
    $region30: #{neural_network_forward.1} parent=1 // pred_check
      _
    $region31: #{neural_network_forward.1} parent=1 // pred_check_branch
      %1877 = sbr.rel (0) target = $region33
    $region32: #{neural_network_forward.1} parent=1 // pred_region
      %s1879 = ssub.s32 1024, 1024
      %1880 = vsyncadd [#allocation3], %s1879
      %s1882 = sshll.u32 [#allocation2], 4
      %s1883 = int_to_ptr.vmem [resolvable:$true] %s1882
      %1885 = dma.vmem_to_hbm [thread:$0]  %s1883, 1024, %s7, [#allocation3]
    $region33: #{neural_network_forward.1} parent=1 // pred_fallthru
      _
    // Predicated region
    $region34: #{neural_network_forward.1} parent=1 // pred_check
      _
    $region35: #{neural_network_forward.1} parent=1 // pred_check_branch
      %1887 = sbr.rel (0) target = $region37
    $region36: #{neural_network_forward.1} parent=1 // pred_region
      %1888 = dma.done [#allocation3], 1024
    $region37: #{neural_network_forward.1} parent=1 // pred_fallthru
      _
    %1889 = vsyncpa [#allocation3], 1

</llo_original>
